<compile_context>
chip_gen: v7x
topology: tpu7x:2x2x1
jax: 0.10.0
libtpu: 0.0.40
codegen_flags: <defaults>
</compile_context>

<pallas_src>
import math
from functools import partial

import jax
import jax.numpy as jnp
from jax import lax
from jax.experimental import pallas as pl
from jax.experimental.pallas import tpu as pltpu

EPS = 1e-6
NEG_INF = -1e9

# contraction (((1,),(1,)),((),())) == x @ W.T for PyTorch (out,in) weights;
# the MXU consumes the operand directly (no transpose materialized).
_DN_T = (((1,), (1,)), ((), ()))


def _layernorm(x, alpha, beta):
    # torch.std is unbiased (ddof=1); the module divides by (std + eps).
    d = x.shape[-1]
    mean = jnp.mean(x, axis=-1, keepdims=True)
    var = jnp.sum((x - mean) ** 2, axis=-1, keepdims=True) / (d - 1)
    std = jnp.sqrt(var)
    return alpha * (x - mean) / (std + EPS) + beta


def _pick_tile(n, max_tile=256):
    """Largest tile <= max_tile that divides n (multiple of 8), else full n."""
    if n <= max_tile:
        return n
    for t in (256, 128, 64, 32, 16, 8):
        if n % t == 0:
            return t
    return n


# --------------------------------------------------------------------------
# Pallas kernels
# --------------------------------------------------------------------------
def _ln_kernel(x_ref, a_ref, b_ref, o_ref):
    o_ref[0] = _layernorm(x_ref[0].astype(jnp.float32),
                          a_ref[...], b_ref[...]).astype(o_ref.dtype)


def _mha_res_kernel(*refs, self_attn, has_kv):
    # Fused: o = x + MHA(LN(x), kv, mask)   (residual + pre-norm in-kernel)
    if has_kv:
        (x_ref, kv_ref, bias_ref, a_ref, b_ref,
         wq_ref, wk_ref, wv_ref, wo_ref, o_ref) = refs
    else:
        # self-attention with the whole sequence in this tile: the q-tile IS the
        # kv source, so no separate kv operand is DMAed and LN is computed once.
        (x_ref, bias_ref, a_ref, b_ref,
         wq_ref, wk_ref, wv_ref, wo_ref, o_ref) = refs
        kv_ref = None

    x = x_ref[0].astype(jnp.float32)          # (tq, D)  residual / query source
    mbias = bias_ref[0]                       # (tq, Sk) additive mask bias (0 / -1e9)
    alpha = a_ref[...]                        # (1, D)
    beta = b_ref[...]                         # (1, D)

    xn_q = _layernorm(x, alpha, beta)
    if not has_kv:
        xn_kv = xn_q
    else:
        kv = kv_ref[0].astype(jnp.float32)    # (Sk, D)
        xn_kv = _layernorm(kv, alpha, beta) if self_attn else kv

    h = wq_ref.shape[0]
    acc = x                                   # fused residual: out = x + sum_i ctx_i @ wo_i
    for i in range(h):                        # static unroll; independent MXU work per head
        wq_i = wq_ref[i]                      # (dk, D) leading-dim ref index; pre-scaled 1/sqrt(dk)
        wk_i = wk_ref[i]
        wv_i = wv_ref[i]
        wo_i = wo_ref[i]                      # (dk, D) pre-transposed in wrapper
        q_i = lax.dot_general(xn_q, wq_i, _DN_T, preferred_element_type=jnp.float32)   # (tq, dk)
        k_i = lax.dot_general(xn_kv, wk_i, _DN_T, preferred_element_type=jnp.float32)  # (Sk, dk)
        v_i = lax.dot_general(xn_kv, wv_i, _DN_T, preferred_element_type=jnp.float32)  # (Sk, dk)

        s = lax.dot_general(q_i, k_i, _DN_T, preferred_element_type=jnp.float32)       # (tq, Sk)
        s = s + mbias                          # scale already folded into wq
        m = jnp.max(s, axis=-1, keepdims=True)
        p = jnp.exp(s - m)
        l = jnp.sum(p, axis=-1, keepdims=True)
        inv_l = pl.reciprocal(l, approx=True)                                          # EUP slot
        ctx = jnp.dot(p, v_i, preferred_element_type=jnp.float32) * inv_l              # (tq, dk)
        acc = acc + jnp.dot(ctx, wo_i, preferred_element_type=jnp.float32)             # (tq, D)

    o_ref[0] = acc.astype(o_ref.dtype)


def _ffn_res_kernel(x_ref, a_ref, b_ref, w1_ref, b1_ref, w2_ref, b2_ref, *rest, final_ln):
    # Fused: o = x + linear_2(relu(linear_1(LN(x))))        [+ optional final LayerNorm]
    o_ref = rest[-1]
    x = x_ref[0].astype(jnp.float32)          # (ts, D)
    xn = _layernorm(x, a_ref[...], b_ref[...])
    h1 = lax.dot_general(xn, w1_ref[...], _DN_T, preferred_element_type=jnp.float32) + b1_ref[...]
    h1 = jnp.maximum(h1, 0.0)
    out = x + lax.dot_general(h1, w2_ref[...], _DN_T,
                              preferred_element_type=jnp.float32) + b2_ref[...]
    if final_ln:                              # fused decoder-final LayerNorm (last layer only)
        out = _layernorm(out, rest[0][...], rest[1][...])
    o_ref[0] = out.astype(o_ref.dtype)


# --------------------------------------------------------------------------
# Wrappers
# --------------------------------------------------------------------------
def layernorm(x, alpha, beta):
    B, S, D = x.shape
    ts = _pick_tile(S)
    return pl.pallas_call(
        _ln_kernel,
        out_shape=jax.ShapeDtypeStruct((B, S, D), x.dtype),
        grid=(B, S // ts),
        in_specs=[
            pl.BlockSpec((1, ts, D), lambda b, s: (b, s, 0)),
            pl.BlockSpec((1, D), lambda b, s: (0, 0)),
            pl.BlockSpec((1, D), lambda b, s: (0, 0)),
        ],
        out_specs=pl.BlockSpec((1, ts, D), lambda b, s: (b, s, 0)),
        compiler_params=pltpu.CompilerParams(
            dimension_semantics=("parallel", "parallel")),
    )(x, alpha.reshape(1, D), beta.reshape(1, D))


def mha_residual(x, xkv, bias, wq, wk, wv, wo, alpha, beta, h, self_attn):
    B, Sq, D = x.shape
    Sk = xkv.shape[1]
    dk = D // h
    tq = _pick_tile(Sq)
    nq = Sq // tq
    # For self-attention with a single q tile, drop the separate kv operand:
    # the q tile already holds the full sequence.
    has_kv = not (self_attn and nq == 1)

    # Per-head weight layout (h, dk, D): indexed along the leading dim in-kernel,
    # so there is no lane-dim activation slicing and no concat.
    scale = 1.0 / math.sqrt(dk)
    wq_r = wq.reshape(h, dk, D) * scale      # fold attention scale into Wq
    wk_r = wk.reshape(h, dk, D)
    wv_r = wv.reshape(h, dk, D)
    wo_r = jnp.transpose(wo.reshape(D, h, dk), (1, 2, 0))   # wo_r[i, d, o] == wo[o, i*dk + d]

    in_specs = [pl.BlockSpec((1, tq, D), lambda b, q: (b, q, 0))]    # x (residual / q source)
    operands = [x]
    if has_kv:
        in_specs.append(pl.BlockSpec((1, Sk, D), lambda b, q: (b, 0, 0)))  # kv source (resident)
        operands.append(xkv)
    in_specs += [
        pl.BlockSpec((1, tq, Sk), lambda b, q: (b, q, 0)),   # additive mask bias
        pl.BlockSpec((1, D), lambda b, q: (0, 0)),           # LN alpha
        pl.BlockSpec((1, D), lambda b, q: (0, 0)),           # LN bias
        pl.BlockSpec((h, dk, D), lambda b, q: (0, 0, 0)),    # wq (per-head, pre-scaled)
        pl.BlockSpec((h, dk, D), lambda b, q: (0, 0, 0)),    # wk
        pl.BlockSpec((h, dk, D), lambda b, q: (0, 0, 0)),    # wv
        pl.BlockSpec((h, dk, D), lambda b, q: (0, 0, 0)),    # wo (pre-transposed)
    ]
    operands += [bias, alpha.reshape(1, D), beta.reshape(1, D), wq_r, wk_r, wv_r, wo_r]

    cost = pl.CostEstimate(
        flops=int(2 * B * D * D * (2 * Sq + 2 * Sk) + 4 * B * Sq * Sk * D),
        transcendentals=int(B * h * Sq * Sk),
        bytes_accessed=int(4 * (2 * B * Sq * D + B * Sk * D + B * Sq * Sk + 4 * D * D)),
    )

    return pl.pallas_call(
        partial(_mha_res_kernel, self_attn=self_attn, has_kv=has_kv),
        out_shape=jax.ShapeDtypeStruct((B, Sq, D), x.dtype),
        grid=(B, nq),
        in_specs=in_specs,
        out_specs=pl.BlockSpec((1, tq, D), lambda b, q: (b, q, 0)),
        compiler_params=pltpu.CompilerParams(
            dimension_semantics=("parallel", "parallel")),
        cost_estimate=cost,
    )(*operands)


def ffn_residual(x, w1, b1, w2, b2, alpha, beta, final_alpha=None, final_beta=None):
    B, S, D = x.shape
    Dff = w1.shape[0]
    ts = _pick_tile(S)
    final_ln = final_alpha is not None

    in_specs = [
        pl.BlockSpec((1, ts, D), lambda b, s: (b, s, 0)),
        pl.BlockSpec((1, D), lambda b, s: (0, 0)),
        pl.BlockSpec((1, D), lambda b, s: (0, 0)),
        pl.BlockSpec((Dff, D), lambda b, s: (0, 0)),
        pl.BlockSpec((1, Dff), lambda b, s: (0, 0)),
        pl.BlockSpec((D, Dff), lambda b, s: (0, 0)),
        pl.BlockSpec((1, D), lambda b, s: (0, 0)),
    ]
    operands = [x, alpha.reshape(1, D), beta.reshape(1, D),
                w1, b1.reshape(1, Dff), w2, b2.reshape(1, D)]
    if final_ln:
        in_specs += [pl.BlockSpec((1, D), lambda b, s: (0, 0)),
                     pl.BlockSpec((1, D), lambda b, s: (0, 0))]
        operands += [final_alpha.reshape(1, D), final_beta.reshape(1, D)]

    cost = pl.CostEstimate(
        flops=int(4 * B * S * D * Dff),
        transcendentals=0,
        bytes_accessed=int(4 * (2 * B * S * D + 2 * D * Dff + D + Dff)),
    )
    return pl.pallas_call(
        partial(_ffn_res_kernel, final_ln=final_ln),
        out_shape=jax.ShapeDtypeStruct((B, S, D), x.dtype),
        grid=(B, S // ts),
        in_specs=in_specs,
        out_specs=pl.BlockSpec((1, ts, D), lambda b, s: (b, s, 0)),
        compiler_params=pltpu.CompilerParams(
            dimension_semantics=("parallel", "parallel")),
        cost_estimate=cost,
    )(*operands)


# --------------------------------------------------------------------------
# Parameter init (deterministic, mirrors module __init__ shapes)
# --------------------------------------------------------------------------
def init_params(key, hidden_dim, n_layers):
    d_ff = hidden_dim

    def lin_w(k, out_dim, in_dim):
        bound = 1.0 / math.sqrt(in_dim)
        return jax.random.uniform(k, (out_dim, in_dim), jnp.float32, -bound, bound)

    def lin_b(k, out_dim, in_dim):
        bound = 1.0 / math.sqrt(in_dim)
        return jax.random.uniform(k, (out_dim,), jnp.float32, -bound, bound)

    layer_keys = jax.random.split(key, n_layers)
    layers = []
    for lk in layer_keys:
        ks = jax.random.split(lk, 12)
        layers.append({
            "self": {"wq": lin_w(ks[0], hidden_dim, hidden_dim),
                     "wk": lin_w(ks[1], hidden_dim, hidden_dim),
                     "wv": lin_w(ks[2], hidden_dim, hidden_dim),
                     "wo": lin_w(ks[3], hidden_dim, hidden_dim)},
            "cross": {"wq": lin_w(ks[4], hidden_dim, hidden_dim),
                      "wk": lin_w(ks[5], hidden_dim, hidden_dim),
                      "wv": lin_w(ks[6], hidden_dim, hidden_dim),
                      "wo": lin_w(ks[7], hidden_dim, hidden_dim)},
            "ffn": {"w1": lin_w(ks[8], d_ff, hidden_dim),
                    "b1": lin_b(ks[9], d_ff, hidden_dim),
                    "w2": lin_w(ks[10], hidden_dim, d_ff),
                    "b2": lin_b(ks[11], hidden_dim, d_ff)},
            # LayerNormalization __init__: alpha=ones, bias=zeros
            "norms": [{"alpha": jnp.ones((hidden_dim,), jnp.float32),
                       "bias": jnp.zeros((hidden_dim,), jnp.float32)} for _ in range(3)],
        })
    final_norm = {"alpha": jnp.ones((hidden_dim,), jnp.float32),
                  "bias": jnp.zeros((hidden_dim,), jnp.float32)}
    return {"layers": layers, "final_norm": final_norm}


# --------------------------------------------------------------------------
# Forward
# --------------------------------------------------------------------------
def _prep_bias(mask, B, Sq, Sk):
    # Broadcast a PyTorch-style (B_or_1, 1, Sq_or_1, Sk) 0/1 mask to (B, Sq, Sk)
    # and convert once into an additive bias (0 visible, -1e9 masked).
    m = jnp.broadcast_to(mask.astype(jnp.float32), (B, 1, Sq, Sk))[:, 0]
    return jnp.where(m == 0, NEG_INF, 0.0).astype(jnp.float32)


def decoder_forward(params, x, encoder_output, src_mask, tgt_mask, h):
    B, St, D = x.shape
    Ss = encoder_output.shape[1]
    tgt_bias = _prep_bias(tgt_mask, B, St, St)
    src_bias = _prep_bias(src_mask, B, St, Ss)

    layers = params["layers"]
    n_layers = len(layers)
    for li, layer in enumerate(layers):
        n0, n1, n2 = layer["norms"]
        sa, ca, ff = layer["self"], layer["cross"], layer["ffn"]
        # ResidualConnection 0: x + SelfAttn(LN(x))        (dropout = identity in eval)
        x = mha_residual(x, x, tgt_bias, sa["wq"], sa["wk"], sa["wv"], sa["wo"],
                         n0["alpha"], n0["bias"], h, self_attn=True)
        # ResidualConnection 1: x + CrossAttn(LN(x), enc)
        x = mha_residual(x, encoder_output, src_bias, ca["wq"], ca["wk"], ca["wv"], ca["wo"],
                         n1["alpha"], n1["bias"], h, self_attn=False)
        # ResidualConnection 2: x + FFN(LN(x))  [+ fused final LayerNorm on the last layer]
        is_last = (li == n_layers - 1)
        x = ffn_residual(x, ff["w1"], ff["b1"], ff["w2"], ff["b2"],
                         n2["alpha"], n2["bias"],
                         params["final_norm"]["alpha"] if is_last else None,
                         params["final_norm"]["bias"] if is_last else None)

    if n_layers == 0:   # fallback: standalone final LayerNorm
        x = layernorm(x, params["final_norm"]["alpha"], params["final_norm"]["bias"])
    return x


# --------------------------------------------------------------------------
# Pure-JAX reference (for correctness check)
# --------------------------------------------------------------------------
def ref_forward(params, x, encoder_output, src_mask, tgt_mask, h):
    def ln(x, a, b):
        mean = x.mean(-1, keepdims=True)
        std = jnp.sqrt(jnp.sum((x - mean) ** 2, -1, keepdims=True) / (x.shape[-1] - 1))
        return a * (x - mean) / (std + EPS) + b

    def attn(xq, xkv, mask4, p):
        B, Sq, D = xq.shape
        Sk = xkv.shape[1]
        dk = D // h
        q = (xq @ p["wq"].T).reshape(B, Sq, h, dk).transpose(0, 2, 1, 3)
        k = (xkv @ p["wk"].T).reshape(B, Sk, h, dk).transpose(0, 2, 1, 3)
        v = (xkv @ p["wv"].T).reshape(B, Sk, h, dk).transpose(0, 2, 1, 3)
        s = q @ k.transpose(0, 1, 3, 2) / math.sqrt(dk)
        s = jnp.where(mask4 == 0, NEG_INF, s)
        w = jax.nn.softmax(s, axis=-1)
        o = (w @ v).transpose(0, 2, 1, 3).reshape(B, Sq, D)
        return o @ p["wo"].T

    for layer in params["layers"]:
        xn = ln(x, layer["norms"][0]["alpha"], layer["norms"][0]["bias"])
        x = x + attn(xn, xn, tgt_mask, layer["self"])
        xn = ln(x, layer["norms"][1]["alpha"], layer["norms"][1]["bias"])
        x = x + attn(xn, encoder_output, src_mask, layer["cross"])
        xn = ln(x, layer["norms"][2]["alpha"], layer["norms"][2]["bias"])
        ff = layer["ffn"]
        x = x + (jnp.maximum(xn @ ff["w1"].T + ff["b1"], 0.0) @ ff["w2"].T + ff["b2"])
    return ln(x, params["final_norm"]["alpha"], params["final_norm"]["bias"])


# --------------------------------------------------------------------------
if __name__ == "__main__":
    B, St, Ss, D, H, N = 2, 8, 8, 32, 4, 2

    key = jax.random.PRNGKey(0)
    kx, ke, kp = jax.random.split(key, 3)
    x = jax.random.normal(kx, (B, St, D), jnp.float32)
    encoder_output = jax.random.normal(ke, (B, Ss, D), jnp.float32)
    tgt_mask = jnp.tril(jnp.ones((St, St), jnp.float32))[None, None]   # (1, 1, St, St) causal
    src_mask = jnp.ones((B, 1, 1, Ss), jnp.float32)                    # (B, 1, 1, Ss) all-visible

    params = init_params(kp, D, N)

    out = decoder_forward(params, x, encoder_output, src_mask, tgt_mask, H)
    out = jax.block_until_ready(out)

    ref = ref_forward(params, x, encoder_output, src_mask, tgt_mask, H)
    assert out.shape == (B, St, D)
    # Tolerance slightly relaxed vs f32 exact: softmax normalization uses the
    # approximate EUP reciprocal (pl.reciprocal(approx=True)).
    err = float(jnp.max(jnp.abs(out - ref)))
    assert jnp.allclose(out, ref, atol=1e-2, rtol=1e-2), f"Pallas mismatch, max abs err={err}"

    print("KERNEL_OK")
</pallas_src>

<mosaic_0001>
module attributes {stable_mosaic.version = 11 : i64} {
  func.func @_mha_res_kernel(%arg0: i32, %arg1: i32, %arg2: memref<1x8x32xf32, #tpu.memory_space<vmem>>, %arg3: memref<1x8x8xf32, #tpu.memory_space<vmem>>, %arg4: memref<1x32xf32, #tpu.memory_space<vmem>>, %arg5: memref<1x32xf32, #tpu.memory_space<vmem>>, %arg6: memref<4x8x32xf32, #tpu.memory_space<vmem>>, %arg7: memref<4x8x32xf32, #tpu.memory_space<vmem>>, %arg8: memref<4x8x32xf32, #tpu.memory_space<vmem>>, %arg9: memref<4x8x32xf32, #tpu.memory_space<vmem>>, %arg10: memref<1x8x32xf32, #tpu.memory_space<vmem>>) attributes {dimension_semantics = [#tpu.dimension_semantics<parallel>, #tpu.dimension_semantics<parallel>], iteration_bounds = array<i64: 2, 1>, scalar_prefetch = 0 : i64, scratch_operands = 0 : i64, tpu.core_type = #tpu.core_type<tc>, window_params = [{transform_indices = @transform_0, window_bounds = array<i64: 1, 8, 32>}, {transform_indices = @transform_1, window_bounds = array<i64: 1, 8, 8>}, {pipeline_mode = #tpu.pipeline_mode<synchronous>, transform_indices = @transform_2, window_bounds = array<i64: 1, 32>}, {pipeline_mode = #tpu.pipeline_mode<synchronous>, transform_indices = @transform_3, window_bounds = array<i64: 1, 32>}, {pipeline_mode = #tpu.pipeline_mode<synchronous>, transform_indices = @transform_4, window_bounds = array<i64: 4, 8, 32>}, {pipeline_mode = #tpu.pipeline_mode<synchronous>, transform_indices = @transform_5, window_bounds = array<i64: 4, 8, 32>}, {pipeline_mode = #tpu.pipeline_mode<synchronous>, transform_indices = @transform_6, window_bounds = array<i64: 4, 8, 32>}, {pipeline_mode = #tpu.pipeline_mode<synchronous>, transform_indices = @transform_7, window_bounds = array<i64: 4, 8, 32>}, {transform_indices = @transform_8, window_bounds = array<i64: 1, 8, 32>}]} {
    %c0 = arith.constant 0 : index
    %c0_0 = arith.constant 0 : index
    %c0_1 = arith.constant 0 : index
    %0 = vector.load %arg2[%c0, %c0_0, %c0_1] : memref<1x8x32xf32, #tpu.memory_space<vmem>>, vector<1x8x32xf32>
    %1 = vector.shape_cast %0 : vector<1x8x32xf32> to vector<8x32xf32>
    %c0_2 = arith.constant 0 : index
    %c0_3 = arith.constant 0 : index
    %c0_4 = arith.constant 0 : index
    %2 = vector.load %arg3[%c0_2, %c0_3, %c0_4] : memref<1x8x8xf32, #tpu.memory_space<vmem>>, vector<1x8x8xf32>
    %3 = vector.shape_cast %2 : vector<1x8x8xf32> to vector<8x8xf32>
    %c0_5 = arith.constant 0 : index
    %c0_6 = arith.constant 0 : index
    %4 = vector.load %arg4[%c0_5, %c0_6] : memref<1x32xf32, #tpu.memory_space<vmem>>, vector<1x32xf32>
    %c0_7 = arith.constant 0 : index
    %c0_8 = arith.constant 0 : index
    %5 = vector.load %arg5[%c0_7, %c0_8] : memref<1x32xf32, #tpu.memory_space<vmem>>, vector<1x32xf32>
    %cst = arith.constant dense<0.000000e+00> : vector<8xf32>
    %6 = vector.multi_reduction <add>, %1, %cst [1] : vector<8x32xf32> to vector<8xf32>
    %7 = vector.shape_cast %6 : vector<8xf32> to vector<8x1xf32>
    %cst_9 = arith.constant 3.200000e+01 : f32
    %8 = vector.broadcast %cst_9 : f32 to vector<8x1xf32>
    %9 = arith.divf %7, %8 : vector<8x1xf32>
    %10 = vector.broadcast %9 : vector<8x1xf32> to vector<8x32xf32>
    %11 = arith.subf %1, %10 : vector<8x32xf32>
    %12 = arith.mulf %11, %11 : vector<8x32xf32>
    %cst_10 = arith.constant dense<0.000000e+00> : vector<8xf32>
    %13 = vector.multi_reduction <add>, %12, %cst_10 [1] : vector<8x32xf32> to vector<8xf32>
    %14 = vector.shape_cast %13 : vector<8xf32> to vector<8x1xf32>
    %cst_11 = arith.constant 3.100000e+01 : f32
    %15 = vector.broadcast %cst_11 : f32 to vector<8x1xf32>
    %16 = arith.divf %14, %15 : vector<8x1xf32>
    %17 = math.sqrt %16 : vector<8x1xf32>
    %18 = vector.broadcast %9 : vector<8x1xf32> to vector<8x32xf32>
    %19 = arith.subf %1, %18 : vector<8x32xf32>
    %20 = vector.broadcast %4 : vector<1x32xf32> to vector<8x32xf32>
    %21 = arith.mulf %20, %19 : vector<8x32xf32>
    %cst_12 = arith.constant 9.99999997E-7 : f32
    %22 = vector.broadcast %cst_12 : f32 to vector<8x1xf32>
    %23 = arith.addf %17, %22 : vector<8x1xf32>
    %24 = vector.broadcast %23 : vector<8x1xf32> to vector<8x32xf32>
    %25 = arith.divf %21, %24 : vector<8x32xf32>
    %26 = vector.broadcast %5 : vector<1x32xf32> to vector<8x32xf32>
    %27 = arith.addf %25, %26 : vector<8x32xf32>
    %c0_13 = arith.constant 0 : index
    %c0_14 = arith.constant 0 : index
    %c0_15 = arith.constant 0 : index
    %28 = vector.load %arg6[%c0_13, %c0_14, %c0_15] : memref<4x8x32xf32, #tpu.memory_space<vmem>>, vector<1x8x32xf32>
    %29 = vector.shape_cast %28 : vector<1x8x32xf32> to vector<8x32xf32>
    %c0_16 = arith.constant 0 : index
    %c0_17 = arith.constant 0 : index
    %c0_18 = arith.constant 0 : index
    %30 = vector.load %arg7[%c0_16, %c0_17, %c0_18] : memref<4x8x32xf32, #tpu.memory_space<vmem>>, vector<1x8x32xf32>
    %31 = vector.shape_cast %30 : vector<1x8x32xf32> to vector<8x32xf32>
    %c0_19 = arith.constant 0 : index
    %c0_20 = arith.constant 0 : index
    %c0_21 = arith.constant 0 : index
    %32 = vector.load %arg8[%c0_19, %c0_20, %c0_21] : memref<4x8x32xf32, #tpu.memory_space<vmem>>, vector<1x8x32xf32>
    %33 = vector.shape_cast %32 : vector<1x8x32xf32> to vector<8x32xf32>
    %c0_22 = arith.constant 0 : index
    %c0_23 = arith.constant 0 : index
    %c0_24 = arith.constant 0 : index
    %34 = vector.load %arg9[%c0_22, %c0_23, %c0_24] : memref<4x8x32xf32, #tpu.memory_space<vmem>>, vector<1x8x32xf32>
    %35 = vector.shape_cast %34 : vector<1x8x32xf32> to vector<8x32xf32>
    %cst_25 = arith.constant dense<0.000000e+00> : vector<8x8xf32>
    %36 = tpu.matmul %27, %29, %cst_25 {dimension_numbers = #tpu.dot_dimension_numbers<[1], [1], [0], [0], [0, 0, 1, 0], [], []>} : vector<8x32xf32>, vector<8x32xf32>, vector<8x8xf32> -> vector<8x8xf32>
    %cst_26 = arith.constant dense<0.000000e+00> : vector<8x8xf32>
    %37 = tpu.matmul %27, %31, %cst_26 {dimension_numbers = #tpu.dot_dimension_numbers<[1], [1], [0], [0], [0, 0, 1, 0], [], []>} : vector<8x32xf32>, vector<8x32xf32>, vector<8x8xf32> -> vector<8x8xf32>
    %cst_27 = arith.constant dense<0.000000e+00> : vector<8x8xf32>
    %38 = tpu.matmul %27, %33, %cst_27 {dimension_numbers = #tpu.dot_dimension_numbers<[1], [1], [0], [0], [0, 0, 1, 0], [], []>} : vector<8x32xf32>, vector<8x32xf32>, vector<8x8xf32> -> vector<8x8xf32>
    %cst_28 = arith.constant dense<0.000000e+00> : vector<8x8xf32>
    %39 = tpu.matmul %36, %37, %cst_28 {dimension_numbers = #tpu.dot_dimension_numbers<[1], [1], [0], [0], [0, 0, 1, 0], [], []>} : vector<8x8xf32>, vector<8x8xf32>, vector<8x8xf32> -> vector<8x8xf32>
    %40 = arith.addf %39, %3 : vector<8x8xf32>
    %cst_29 = arith.constant dense<0xFF800000> : vector<8xf32>
    %41 = vector.multi_reduction <maximumf>, %40, %cst_29 [1] : vector<8x8xf32> to vector<8xf32>
    %42 = vector.shape_cast %41 : vector<8xf32> to vector<8x1xf32>
    %43 = vector.broadcast %42 : vector<8x1xf32> to vector<8x8xf32>
    %44 = arith.subf %40, %43 : vector<8x8xf32>
    %45 = math.exp %44 : vector<8x8xf32>
    %cst_30 = arith.constant dense<0.000000e+00> : vector<8xf32>
    %46 = vector.multi_reduction <add>, %45, %cst_30 [1] : vector<8x8xf32> to vector<8xf32>
    %47 = vector.shape_cast %46 : vector<8xf32> to vector<8x1xf32>
    %48 = tpu.reciprocal %47 {approx = true} : vector<8x1xf32> -> vector<8x1xf32>
    %cst_31 = arith.constant dense<0.000000e+00> : vector<8x8xf32>
    %49 = tpu.matmul %45, %38, %cst_31 {dimension_numbers = #tpu.dot_dimension_numbers<[1], [0], [0], [1], [0, 0, 1, 1], [], []>} : vector<8x8xf32>, vector<8x8xf32>, vector<8x8xf32> -> vector<8x8xf32>
    %50 = vector.broadcast %48 : vector<8x1xf32> to vector<8x8xf32>
    %51 = arith.mulf %49, %50 : vector<8x8xf32>
    %cst_32 = arith.constant dense<0.000000e+00> : vector<8x32xf32>
    %52 = tpu.matmul %51, %35, %cst_32 {dimension_numbers = #tpu.dot_dimension_numbers<[1], [0], [0], [1], [0, 0, 1, 1], [], []>} : vector<8x8xf32>, vector<8x32xf32>, vector<8x32xf32> -> vector<8x32xf32>
    %53 = arith.addf %1, %52 : vector<8x32xf32>
    %c1 = arith.constant 1 : index
    %c0_33 = arith.constant 0 : index
    %c0_34 = arith.constant 0 : index
    %54 = vector.load %arg6[%c1, %c0_33, %c0_34] : memref<4x8x32xf32, #tpu.memory_space<vmem>>, vector<1x8x32xf32>
    %55 = vector.shape_cast %54 : vector<1x8x32xf32> to vector<8x32xf32>
    %c1_35 = arith.constant 1 : index
    %c0_36 = arith.constant 0 : index
    %c0_37 = arith.constant 0 : index
    %56 = vector.load %arg7[%c1_35, %c0_36, %c0_37] : memref<4x8x32xf32, #tpu.memory_space<vmem>>, vector<1x8x32xf32>
    %57 = vector.shape_cast %56 : vector<1x8x32xf32> to vector<8x32xf32>
    %c1_38 = arith.constant 1 : index
    %c0_39 = arith.constant 0 : index
    %c0_40 = arith.constant 0 : index
    %58 = vector.load %arg8[%c1_38, %c0_39, %c0_40] : memref<4x8x32xf32, #tpu.memory_space<vmem>>, vector<1x8x32xf32>
    %59 = vector.shape_cast %58 : vector<1x8x32xf32> to vector<8x32xf32>
    %c1_41 = arith.constant 1 : index
    %c0_42 = arith.constant 0 : index
    %c0_43 = arith.constant 0 : index
    %60 = vector.load %arg9[%c1_41, %c0_42, %c0_43] : memref<4x8x32xf32, #tpu.memory_space<vmem>>, vector<1x8x32xf32>
    %61 = vector.shape_cast %60 : vector<1x8x32xf32> to vector<8x32xf32>
    %cst_44 = arith.constant dense<0.000000e+00> : vector<8x8xf32>
    %62 = tpu.matmul %27, %55, %cst_44 {dimension_numbers = #tpu.dot_dimension_numbers<[1], [1], [0], [0], [0, 0, 1, 0], [], []>} : vector<8x32xf32>, vector<8x32xf32>, vector<8x8xf32> -> vector<8x8xf32>
    %cst_45 = arith.constant dense<0.000000e+00> : vector<8x8xf32>
    %63 = tpu.matmul %27, %57, %cst_45 {dimension_numbers = #tpu.dot_dimension_numbers<[1], [1], [0], [0], [0, 0, 1, 0], [], []>} : vector<8x32xf32>, vector<8x32xf32>, vector<8x8xf32> -> vector<8x8xf32>
    %cst_46 = arith.constant dense<0.000000e+00> : vector<8x8xf32>
    %64 = tpu.matmul %27, %59, %cst_46 {dimension_numbers = #tpu.dot_dimension_numbers<[1], [1], [0], [0], [0, 0, 1, 0], [], []>} : vector<8x32xf32>, vector<8x32xf32>, vector<8x8xf32> -> vector<8x8xf32>
    %cst_47 = arith.constant dense<0.000000e+00> : vector<8x8xf32>
    %65 = tpu.matmul %62, %63, %cst_47 {dimension_numbers = #tpu.dot_dimension_numbers<[1], [1], [0], [0], [0, 0, 1, 0], [], []>} : vector<8x8xf32>, vector<8x8xf32>, vector<8x8xf32> -> vector<8x8xf32>
    %66 = arith.addf %65, %3 : vector<8x8xf32>
    %cst_48 = arith.constant dense<0xFF800000> : vector<8xf32>
    %67 = vector.multi_reduction <maximumf>, %66, %cst_48 [1] : vector<8x8xf32> to vector<8xf32>
    %68 = vector.shape_cast %67 : vector<8xf32> to vector<8x1xf32>
    %69 = vector.broadcast %68 : vector<8x1xf32> to vector<8x8xf32>
    %70 = arith.subf %66, %69 : vector<8x8xf32>
    %71 = math.exp %70 : vector<8x8xf32>
    %cst_49 = arith.constant dense<0.000000e+00> : vector<8xf32>
    %72 = vector.multi_reduction <add>, %71, %cst_49 [1] : vector<8x8xf32> to vector<8xf32>
    %73 = vector.shape_cast %72 : vector<8xf32> to vector<8x1xf32>
    %74 = tpu.reciprocal %73 {approx = true} : vector<8x1xf32> -> vector<8x1xf32>
    %cst_50 = arith.constant dense<0.000000e+00> : vector<8x8xf32>
    %75 = tpu.matmul %71, %64, %cst_50 {dimension_numbers = #tpu.dot_dimension_numbers<[1], [0], [0], [1], [0, 0, 1, 1], [], []>} : vector<8x8xf32>, vector<8x8xf32>, vector<8x8xf32> -> vector<8x8xf32>
    %76 = vector.broadcast %74 : vector<8x1xf32> to vector<8x8xf32>
    %77 = arith.mulf %75, %76 : vector<8x8xf32>
    %cst_51 = arith.constant dense<0.000000e+00> : vector<8x32xf32>
    %78 = tpu.matmul %77, %61, %cst_51 {dimension_numbers = #tpu.dot_dimension_numbers<[1], [0], [0], [1], [0, 0, 1, 1], [], []>} : vector<8x8xf32>, vector<8x32xf32>, vector<8x32xf32> -> vector<8x32xf32>
    %79 = arith.addf %53, %78 : vector<8x32xf32>
    %c2 = arith.constant 2 : index
    %c0_52 = arith.constant 0 : index
    %c0_53 = arith.constant 0 : index
    %80 = vector.load %arg6[%c2, %c0_52, %c0_53] : memref<4x8x32xf32, #tpu.memory_space<vmem>>, vector<1x8x32xf32>
    %81 = vector.shape_cast %80 : vector<1x8x32xf32> to vector<8x32xf32>
    %c2_54 = arith.constant 2 : index
    %c0_55 = arith.constant 0 : index
    %c0_56 = arith.constant 0 : index
    %82 = vector.load %arg7[%c2_54, %c0_55, %c0_56] : memref<4x8x32xf32, #tpu.memory_space<vmem>>, vector<1x8x32xf32>
    %83 = vector.shape_cast %82 : vector<1x8x32xf32> to vector<8x32xf32>
    %c2_57 = arith.constant 2 : index
    %c0_58 = arith.constant 0 : index
    %c0_59 = arith.constant 0 : index
    %84 = vector.load %arg8[%c2_57, %c0_58, %c0_59] : memref<4x8x32xf32, #tpu.memory_space<vmem>>, vector<1x8x32xf32>
    %85 = vector.shape_cast %84 : vector<1x8x32xf32> to vector<8x32xf32>
    %c2_60 = arith.constant 2 : index
    %c0_61 = arith.constant 0 : index
    %c0_62 = arith.constant 0 : index
    %86 = vector.load %arg9[%c2_60, %c0_61, %c0_62] : memref<4x8x32xf32, #tpu.memory_space<vmem>>, vector<1x8x32xf32>
    %87 = vector.shape_cast %86 : vector<1x8x32xf32> to vector<8x32xf32>
    %cst_63 = arith.constant dense<0.000000e+00> : vector<8x8xf32>
    %88 = tpu.matmul %27, %81, %cst_63 {dimension_numbers = #tpu.dot_dimension_numbers<[1], [1], [0], [0], [0, 0, 1, 0], [], []>} : vector<8x32xf32>, vector<8x32xf32>, vector<8x8xf32> -> vector<8x8xf32>
    %cst_64 = arith.constant dense<0.000000e+00> : vector<8x8xf32>
    %89 = tpu.matmul %27, %83, %cst_64 {dimension_numbers = #tpu.dot_dimension_numbers<[1], [1], [0], [0], [0, 0, 1, 0], [], []>} : vector<8x32xf32>, vector<8x32xf32>, vector<8x8xf32> -> vector<8x8xf32>
    %cst_65 = arith.constant dense<0.000000e+00> : vector<8x8xf32>
    %90 = tpu.matmul %27, %85, %cst_65 {dimension_numbers = #tpu.dot_dimension_numbers<[1], [1], [0], [0], [0, 0, 1, 0], [], []>} : vector<8x32xf32>, vector<8x32xf32>, vector<8x8xf32> -> vector<8x8xf32>
    %cst_66 = arith.constant dense<0.000000e+00> : vector<8x8xf32>
    %91 = tpu.matmul %88, %89, %cst_66 {dimension_numbers = #tpu.dot_dimension_numbers<[1], [1], [0], [0], [0, 0, 1, 0], [], []>} : vector<8x8xf32>, vector<8x8xf32>, vector<8x8xf32> -> vector<8x8xf32>
    %92 = arith.addf %91, %3 : vector<8x8xf32>
    %cst_67 = arith.constant dense<0xFF800000> : vector<8xf32>
    %93 = vector.multi_reduction <maximumf>, %92, %cst_67 [1] : vector<8x8xf32> to vector<8xf32>
    %94 = vector.shape_cast %93 : vector<8xf32> to vector<8x1xf32>
    %95 = vector.broadcast %94 : vector<8x1xf32> to vector<8x8xf32>
    %96 = arith.subf %92, %95 : vector<8x8xf32>
    %97 = math.exp %96 : vector<8x8xf32>
    %cst_68 = arith.constant dense<0.000000e+00> : vector<8xf32>
    %98 = vector.multi_reduction <add>, %97, %cst_68 [1] : vector<8x8xf32> to vector<8xf32>
    %99 = vector.shape_cast %98 : vector<8xf32> to vector<8x1xf32>
    %100 = tpu.reciprocal %99 {approx = true} : vector<8x1xf32> -> vector<8x1xf32>
    %cst_69 = arith.constant dense<0.000000e+00> : vector<8x8xf32>
    %101 = tpu.matmul %97, %90, %cst_69 {dimension_numbers = #tpu.dot_dimension_numbers<[1], [0], [0], [1], [0, 0, 1, 1], [], []>} : vector<8x8xf32>, vector<8x8xf32>, vector<8x8xf32> -> vector<8x8xf32>
    %102 = vector.broadcast %100 : vector<8x1xf32> to vector<8x8xf32>
    %103 = arith.mulf %101, %102 : vector<8x8xf32>
    %cst_70 = arith.constant dense<0.000000e+00> : vector<8x32xf32>
    %104 = tpu.matmul %103, %87, %cst_70 {dimension_numbers = #tpu.dot_dimension_numbers<[1], [0], [0], [1], [0, 0, 1, 1], [], []>} : vector<8x8xf32>, vector<8x32xf32>, vector<8x32xf32> -> vector<8x32xf32>
    %105 = arith.addf %79, %104 : vector<8x32xf32>
    %c3 = arith.constant 3 : index
    %c0_71 = arith.constant 0 : index
    %c0_72 = arith.constant 0 : index
    %106 = vector.load %arg6[%c3, %c0_71, %c0_72] : memref<4x8x32xf32, #tpu.memory_space<vmem>>, vector<1x8x32xf32>
    %107 = vector.shape_cast %106 : vector<1x8x32xf32> to vector<8x32xf32>
    %c3_73 = arith.constant 3 : index
    %c0_74 = arith.constant 0 : index
    %c0_75 = arith.constant 0 : index
    %108 = vector.load %arg7[%c3_73, %c0_74, %c0_75] : memref<4x8x32xf32, #tpu.memory_space<vmem>>, vector<1x8x32xf32>
    %109 = vector.shape_cast %108 : vector<1x8x32xf32> to vector<8x32xf32>
    %c3_76 = arith.constant 3 : index
    %c0_77 = arith.constant 0 : index
    %c0_78 = arith.constant 0 : index
    %110 = vector.load %arg8[%c3_76, %c0_77, %c0_78] : memref<4x8x32xf32, #tpu.memory_space<vmem>>, vector<1x8x32xf32>
    %111 = vector.shape_cast %110 : vector<1x8x32xf32> to vector<8x32xf32>
    %c3_79 = arith.constant 3 : index
    %c0_80 = arith.constant 0 : index
    %c0_81 = arith.constant 0 : index
    %112 = vector.load %arg9[%c3_79, %c0_80, %c0_81] : memref<4x8x32xf32, #tpu.memory_space<vmem>>, vector<1x8x32xf32>
    %113 = vector.shape_cast %112 : vector<1x8x32xf32> to vector<8x32xf32>
    %cst_82 = arith.constant dense<0.000000e+00> : vector<8x8xf32>
    %114 = tpu.matmul %27, %107, %cst_82 {dimension_numbers = #tpu.dot_dimension_numbers<[1], [1], [0], [0], [0, 0, 1, 0], [], []>} : vector<8x32xf32>, vector<8x32xf32>, vector<8x8xf32> -> vector<8x8xf32>
    %cst_83 = arith.constant dense<0.000000e+00> : vector<8x8xf32>
    %115 = tpu.matmul %27, %109, %cst_83 {dimension_numbers = #tpu.dot_dimension_numbers<[1], [1], [0], [0], [0, 0, 1, 0], [], []>} : vector<8x32xf32>, vector<8x32xf32>, vector<8x8xf32> -> vector<8x8xf32>
    %cst_84 = arith.constant dense<0.000000e+00> : vector<8x8xf32>
    %116 = tpu.matmul %27, %111, %cst_84 {dimension_numbers = #tpu.dot_dimension_numbers<[1], [1], [0], [0], [0, 0, 1, 0], [], []>} : vector<8x32xf32>, vector<8x32xf32>, vector<8x8xf32> -> vector<8x8xf32>
    %cst_85 = arith.constant dense<0.000000e+00> : vector<8x8xf32>
    %117 = tpu.matmul %114, %115, %cst_85 {dimension_numbers = #tpu.dot_dimension_numbers<[1], [1], [0], [0], [0, 0, 1, 0], [], []>} : vector<8x8xf32>, vector<8x8xf32>, vector<8x8xf32> -> vector<8x8xf32>
    %118 = arith.addf %117, %3 : vector<8x8xf32>
    %cst_86 = arith.constant dense<0xFF800000> : vector<8xf32>
    %119 = vector.multi_reduction <maximumf>, %118, %cst_86 [1] : vector<8x8xf32> to vector<8xf32>
    %120 = vector.shape_cast %119 : vector<8xf32> to vector<8x1xf32>
    %121 = vector.broadcast %120 : vector<8x1xf32> to vector<8x8xf32>
    %122 = arith.subf %118, %121 : vector<8x8xf32>
    %123 = math.exp %122 : vector<8x8xf32>
    %cst_87 = arith.constant dense<0.000000e+00> : vector<8xf32>
    %124 = vector.multi_reduction <add>, %123, %cst_87 [1] : vector<8x8xf32> to vector<8xf32>
    %125 = vector.shape_cast %124 : vector<8xf32> to vector<8x1xf32>
    %126 = tpu.reciprocal %125 {approx = true} : vector<8x1xf32> -> vector<8x1xf32>
    %cst_88 = arith.constant dense<0.000000e+00> : vector<8x8xf32>
    %127 = tpu.matmul %123, %116, %cst_88 {dimension_numbers = #tpu.dot_dimension_numbers<[1], [0], [0], [1], [0, 0, 1, 1], [], []>} : vector<8x8xf32>, vector<8x8xf32>, vector<8x8xf32> -> vector<8x8xf32>
    %128 = vector.broadcast %126 : vector<8x1xf32> to vector<8x8xf32>
    %129 = arith.mulf %127, %128 : vector<8x8xf32>
    %cst_89 = arith.constant dense<0.000000e+00> : vector<8x32xf32>
    %130 = tpu.matmul %129, %113, %cst_89 {dimension_numbers = #tpu.dot_dimension_numbers<[1], [0], [0], [1], [0, 0, 1, 1], [], []>} : vector<8x8xf32>, vector<8x32xf32>, vector<8x32xf32> -> vector<8x32xf32>
    %131 = arith.addf %105, %130 : vector<8x32xf32>
    %c0_90 = arith.constant 0 : index
    %c0_91 = arith.constant 0 : index
    %c0_92 = arith.constant 0 : index
    %132 = vector.load %arg10[%c0_90, %c0_91, %c0_92] : memref<1x8x32xf32, #tpu.memory_space<vmem>>, vector<1x8x32xf32>
    %133 = vector.shape_cast %132 : vector<1x8x32xf32> to vector<8x32xf32>
    %134 = vector.shape_cast %131 : vector<8x32xf32> to vector<1x8x32xf32>
    tpu.vector_store %arg10[%c0_90, %c0_91, %c0_92], %134 {strides = array<i32>} : memref<1x8x32xf32, #tpu.memory_space<vmem>>, vector<1x8x32xf32>,
    return
  }
  func.func @transform_0(%arg0: i32, %arg1: i32) -> (i32, i32, i32) {
    %c0_i32 = arith.constant 0 : i32
    %c0_i32_0 = arith.constant 0 : i32
    return %arg0, %arg1, %c0_i32 : i32, i32, i32
  }
  func.func @transform_1(%arg0: i32, %arg1: i32) -> (i32, i32, i32) {
    %c0_i32 = arith.constant 0 : i32
    %c0_i32_0 = arith.constant 0 : i32
    return %arg0, %arg1, %c0_i32 : i32, i32, i32
  }
  func.func @transform_2(%arg0: i32, %arg1: i32) -> (i32, i32) {
    %c0_i32 = arith.constant 0 : i32
    %c0_i32_0 = arith.constant 0 : i32
    %c0_i32_1 = arith.constant 0 : i32
    return %c0_i32, %c0_i32_0 : i32, i32
  }
  func.func @transform_3(%arg0: i32, %arg1: i32) -> (i32, i32) {
    %c0_i32 = arith.constant 0 : i32
    %c0_i32_0 = arith.constant 0 : i32
    %c0_i32_1 = arith.constant 0 : i32
    return %c0_i32, %c0_i32_0 : i32, i32
  }
  func.func @transform_4(%arg0: i32, %arg1: i32) -> (i32, i32, i32) {
    %c0_i32 = arith.constant 0 : i32
    %c0_i32_0 = arith.constant 0 : i32
    %c0_i32_1 = arith.constant 0 : i32
    %c0_i32_2 = arith.constant 0 : i32
    return %c0_i32, %c0_i32_0, %c0_i32_1 : i32, i32, i32
  }
  func.func @transform_5(%arg0: i32, %arg1: i32) -> (i32, i32, i32) {
    %c0_i32 = arith.constant 0 : i32
    %c0_i32_0 = arith.constant 0 : i32
    %c0_i32_1 = arith.constant 0 : i32
    %c0_i32_2 = arith.constant 0 : i32
    return %c0_i32, %c0_i32_0, %c0_i32_1 : i32, i32, i32
  }
  func.func @transform_6(%arg0: i32, %arg1: i32) -> (i32, i32, i32) {
    %c0_i32 = arith.constant 0 : i32
    %c0_i32_0 = arith.constant 0 : i32
    %c0_i32_1 = arith.constant 0 : i32
    %c0_i32_2 = arith.constant 0 : i32
    return %c0_i32, %c0_i32_0, %c0_i32_1 : i32, i32, i32
  }
  func.func @transform_7(%arg0: i32, %arg1: i32) -> (i32, i32, i32) {
    %c0_i32 = arith.constant 0 : i32
    %c0_i32_0 = arith.constant 0 : i32
    %c0_i32_1 = arith.constant 0 : i32
    %c0_i32_2 = arith.constant 0 : i32
    return %c0_i32, %c0_i32_0, %c0_i32_1 : i32, i32, i32
  }
  func.func @transform_8(%arg0: i32, %arg1: i32) -> (i32, i32, i32) {
    %c0_i32 = arith.constant 0 : i32
    %c0_i32_0 = arith.constant 0 : i32
    return %arg0, %arg1, %c0_i32 : i32, i32, i32
  }
}

</mosaic_0001>

<llo_original>
// kernel: tpu_custom_call.1
$region0: #{tpu_custom_call.1}
  #allocation0 [shape = 'u32[]', space=smem, size = 0x4, offset = 0x4, fixed_abs, tag = 'smem constant byte address 0x4 - core index']
  #allocation1 [shape = 'u32[144,128]{1,0:T(1,128)}', space=vmem, size = 0x12000, scoped, tag = 'internal scratch']
  %s0 = inlined_call_operand.hbm [shape: f32[2,8,32], index: 0, kind: input, shape index: {}]
  %s1 = inlined_call_operand.hbm [shape: f32[2,8,8], index: 1, kind: input, shape index: {}]
  %s2 = inlined_call_operand.vmem [shape: f32[1,32], index: 2, kind: input, shape index: {}]
  %s3 = inlined_call_operand.vmem [shape: f32[1,32], index: 3, kind: input, shape index: {}]
  %s4 = inlined_call_operand.hbm [shape: f32[4,8,32], index: 4, kind: input, shape index: {}]
  %s5 = inlined_call_operand.hbm [shape: f32[4,8,32], index: 5, kind: input, shape index: {}]
  %s6 = inlined_call_operand.hbm [shape: f32[4,8,32], index: 6, kind: input, shape index: {}]
  %s7 = inlined_call_operand.hbm [shape: f32[4,8,32], index: 7, kind: input, shape index: {}]
  %s8 = inlined_call_operand.hbm [shape: f32[2,8,32], index: 8, kind: output, shape index: {}]
  %s9 = sld [smem:[#allocation0]]
  $region89: #{tpu_custom_call.1} parent=0
    _
  %s11 = ssub.s32 1, %s9
  %s12 = scalar_select 0, %s11, %s9
  $region1: #{tpu_custom_call.1} parent=0
    #allocation2 [shape = 'u8[8192]{0}', space=vmem, size = 0x2000, scoped, tag = 'input window, operand 0']
    #allocation3 [shape = 's32[2]{0}', space=sflag, size = 0x8, scoped, tag = 'scoped memory for tpu_custom_call.1']
    #allocation4 [shape = 's32[2]{0}', space=sflag, size = 0x8, scoped, tag = 'scoped memory for tpu_custom_call.1']
    #allocation5 [shape = 'u8[8192]{0}', space=vmem, size = 0x2000, scoped, tag = 'input window, operand 1']
    #allocation6 [shape = 's32[2]{0}', space=sflag, size = 0x8, scoped, tag = 'scoped memory for tpu_custom_call.1']
    #allocation7 [shape = 'u8[16384]{0}', space=vmem, size = 0x4000, scoped, tag = 'input window, operand 4, single buffered']
    #allocation8 [shape = 'u8[16384]{0}', space=vmem, size = 0x4000, scoped, tag = 'input window, operand 5, single buffered']
    #allocation9 [shape = 's32[1]{0}', space=sflag, size = 0x4, scoped, tag = 'scoped memory for tpu_custom_call.1']
    #allocation10 [shape = 'u8[16384]{0}', space=vmem, size = 0x4000, scoped, tag = 'input window, operand 6, single buffered']
    #allocation11 [shape = 'u8[16384]{0}', space=vmem, size = 0x4000, scoped, tag = 'input window, operand 7, single buffered']
    #allocation12 [shape = 's32[1]{0}', space=sflag, size = 0x4, scoped, tag = 'scoped memory for tpu_custom_call.1']
    #allocation13 [shape = 'u8[8192]{0}', space=vmem, size = 0x2000, scoped, tag = 'output window, operand 0']
    %13 = vsyncpa [#allocation3], 0
    %s14 = scalar_lea.sflag [#allocation3], 1
    %15 = vsyncpa %s14, 0
    %16 = vsyncpa [#allocation6], 0
    %s17 = scalar_lea.sflag [#allocation6], 1
    %18 = vsyncpa %s17, 0
    %19 = vsyncpa [#allocation9], 0
    %20 = vsyncpa [#allocation12], 0
    %21 = vsyncpa [#allocation4], 0
    %s22 = scalar_lea.sflag [#allocation4], 1
    %23 = vsyncpa %s22, 0
    loop: start=0, step=1, limit=4
    $region2: #{tpu_custom_call.1} parent=1 // loop_pre_header
      _
    $region3: #{tpu_custom_call.1} parent=1 // loop_header
      %s25 = sphi 0, %s29
      %p26 = scmp.ge.s32.totalorder %s25, 4
      %s32 = sphi 0, %s44
      %s33 = sphi 0, %s40
      %s34 = sphi 0, %s32
      %s35 = sphi 0, %s33
      %s36 = sphi 0, %s34
      %s37 = sphi 0, %s35
      %s49 = sphi 0, %s51
      %s52 = sphi 0, %s49
      %s53 = sphi 0, %s52
      %s69 = sphi 0, %s53
      %s77 = sphi 0, %s79
      %s80 = sphi 0, %s77
      %s81 = sphi 0, %s80
      %s97 = sphi 0, %s81
      %s101 = sphi 0, %s101
      %s103 = sphi 0, %s101
      %s104 = sphi 0, %s103
      %s118 = sphi 0, %s104
      %s122 = sphi 0, %s122
      %s124 = sphi 0, %s122
      %s125 = sphi 0, %s124
      %s139 = sphi 0, %s125
      %s143 = sphi 0, %s143
      %s145 = sphi 0, %s143
      %s146 = sphi 0, %s145
      %s160 = sphi 0, %s146
      %s164 = sphi 0, %s164
      %s166 = sphi 0, %s164
      %s167 = sphi 0, %s166
      %s181 = sphi 0, %s167
      %s185 = sphi 0, %s185
      %s187 = sphi 0, %s185
      %s188 = sphi 0, %s187
      %s202 = sphi 0, %s188
      %s206 = sphi 0, %s206
      %s208 = sphi 0, %s206
      %s209 = sphi 0, %s208
      %s223 = sphi 0, %s209
      %s231 = sphi 0, %s233
      %s234 = sphi 0, %s231
      %s235 = sphi 0, %s234
      %s251 = sphi 0, %s235
    $region4: #{tpu_custom_call.1} parent=1 // loop_header_branch
      %28 = sbr.rel (%p26) target = $region8
    $region5: #{tpu_custom_call.1} parent=1 // loop_body
      %s30 = ssub.s32 %s25, 1
      %s31 = ssub.s32 %s25, 2
      %s38 = sadd.s32 1, %s33
      %p39 = scmp.ge.s32.totalorder %s38, 1
      %s40 = scalar_select %p39, 0, %s38
      %s41 = sadd.s32 1, %s32
      %s42 = scalar_select %p39, %s41, %s32
      %p43 = scmp.ge.s32.totalorder %s42, 2
      %s44 = scalar_select %p43, 0, %s42
      %s45 = ssub.s32 %s32, %s44
      %s46 = ssub.s32 %s33, %s40
      %s47 = sor.u32 %s45, %s46
      %p48 = scmp.eq.s32.totalorder %s47, 0
      %s50 = sadd.s32 %s49, 1
      %s51 = scalar_select %p48, %s49, %s50
      %p54 = pneg %p48
      %p55 = scmp.eq.s32.totalorder %s25, 1
      %p56 = por %p54, %p55
      %p57 = scmp.ne.s32.totalorder %s49, %s52
      %p58 = scmp.eq.s32.totalorder %s25, 0
      %p59 = por %p57, %p58
      %p60 = scmp.ne.s32.totalorder %s49, %s52
      %p61 = scmp.eq.s32.totalorder %s30, 1
      %p62 = por %p60, %p61
      %p63 = scmp.ne.s32.totalorder %s52, %s53
      %p64 = scmp.eq.s32.totalorder %s30, 0
      %p65 = por %p63, %p64
      %p66 = scmp.ne.s32.totalorder %s52, %s53
      %p67 = scmp.eq.s32.totalorder %s31, 1
      %p68 = por %p66, %p67
      %p70 = scmp.ne.s32.totalorder %s53, %s69
      %p71 = scmp.eq.s32.totalorder %s31, 0
      %p72 = por %p70, %p71
      %s73 = ssub.s32 %s32, %s44
      %s74 = ssub.s32 %s33, %s40
      %s75 = sor.u32 %s73, %s74
      %p76 = scmp.eq.s32.totalorder %s75, 0
      %s78 = sadd.s32 %s77, 1
      %s79 = scalar_select %p76, %s77, %s78
      %p82 = pneg %p76
      %p83 = scmp.eq.s32.totalorder %s25, 1
      %p84 = por %p82, %p83
      %p85 = scmp.ne.s32.totalorder %s77, %s80
      %p86 = scmp.eq.s32.totalorder %s25, 0
      %p87 = por %p85, %p86
      %p88 = scmp.ne.s32.totalorder %s77, %s80
      %p89 = scmp.eq.s32.totalorder %s30, 1
      %p90 = por %p88, %p89
      %p91 = scmp.ne.s32.totalorder %s80, %s81
      %p92 = scmp.eq.s32.totalorder %s30, 0
      %p93 = por %p91, %p92
      %p94 = scmp.ne.s32.totalorder %s80, %s81
      %p95 = scmp.eq.s32.totalorder %s31, 1
      %p96 = por %p94, %p95
      %p98 = scmp.ne.s32.totalorder %s81, %s97
      %p99 = scmp.eq.s32.totalorder %s31, 0
      %p100 = por %p98, %p99
      %s102 = sadd.s32 %s101, 1
      %p105 = scmp.eq.s32.totalorder %s25, 1
      %p106 = scmp.ne.s32.totalorder %s101, %s103
      %p107 = scmp.eq.s32.totalorder %s25, 0
      %p108 = por %p106, %p107
      %p109 = scmp.ne.s32.totalorder %s101, %s103
      %p110 = scmp.eq.s32.totalorder %s30, 1
      %p111 = por %p109, %p110
      %p112 = scmp.ne.s32.totalorder %s103, %s104
      %p113 = scmp.eq.s32.totalorder %s30, 0
      %p114 = por %p112, %p113
      %p115 = scmp.ne.s32.totalorder %s103, %s104
      %p116 = scmp.eq.s32.totalorder %s31, 1
      %p117 = por %p115, %p116
      %p119 = scmp.ne.s32.totalorder %s104, %s118
      %p120 = scmp.eq.s32.totalorder %s31, 0
      %p121 = por %p119, %p120
      %s123 = sadd.s32 %s122, 1
      %p126 = scmp.eq.s32.totalorder %s25, 1
      %p127 = scmp.ne.s32.totalorder %s122, %s124
      %p128 = scmp.eq.s32.totalorder %s25, 0
      %p129 = por %p127, %p128
      %p130 = scmp.ne.s32.totalorder %s122, %s124
      %p131 = scmp.eq.s32.totalorder %s30, 1
      %p132 = por %p130, %p131
      %p133 = scmp.ne.s32.totalorder %s124, %s125
      %p134 = scmp.eq.s32.totalorder %s30, 0
      %p135 = por %p133, %p134
      %p136 = scmp.ne.s32.totalorder %s124, %s125
      %p137 = scmp.eq.s32.totalorder %s31, 1
      %p138 = por %p136, %p137
      %p140 = scmp.ne.s32.totalorder %s125, %s139
      %p141 = scmp.eq.s32.totalorder %s31, 0
      %p142 = por %p140, %p141
      %s144 = sadd.s32 %s143, 1
      %p147 = scmp.eq.s32.totalorder %s25, 1
      %p148 = scmp.ne.s32.totalorder %s143, %s145
      %p149 = scmp.eq.s32.totalorder %s25, 0
      %p150 = por %p148, %p149
      %p151 = scmp.ne.s32.totalorder %s143, %s145
      %p152 = scmp.eq.s32.totalorder %s30, 1
      %p153 = por %p151, %p152
      %p154 = scmp.ne.s32.totalorder %s145, %s146
      %p155 = scmp.eq.s32.totalorder %s30, 0
      %p156 = por %p154, %p155
      %p157 = scmp.ne.s32.totalorder %s145, %s146
      %p158 = scmp.eq.s32.totalorder %s31, 1
      %p159 = por %p157, %p158
      %p161 = scmp.ne.s32.totalorder %s146, %s160
      %p162 = scmp.eq.s32.totalorder %s31, 0
      %p163 = por %p161, %p162
      %s165 = sadd.s32 %s164, 1
      %p168 = scmp.eq.s32.totalorder %s25, 1
      %p169 = scmp.ne.s32.totalorder %s164, %s166
      %p170 = scmp.eq.s32.totalorder %s25, 0
      %p171 = por %p169, %p170
      %p172 = scmp.ne.s32.totalorder %s164, %s166
      %p173 = scmp.eq.s32.totalorder %s30, 1
      %p174 = por %p172, %p173
      %p175 = scmp.ne.s32.totalorder %s166, %s167
      %p176 = scmp.eq.s32.totalorder %s30, 0
      %p177 = por %p175, %p176
      %p178 = scmp.ne.s32.totalorder %s166, %s167
      %p179 = scmp.eq.s32.totalorder %s31, 1
      %p180 = por %p178, %p179
      %p182 = scmp.ne.s32.totalorder %s167, %s181
      %p183 = scmp.eq.s32.totalorder %s31, 0
      %p184 = por %p182, %p183
      %s186 = sadd.s32 %s185, 1
      %p189 = scmp.eq.s32.totalorder %s25, 1
      %p190 = scmp.ne.s32.totalorder %s185, %s187
      %p191 = scmp.eq.s32.totalorder %s25, 0
      %p192 = por %p190, %p191
      %p193 = scmp.ne.s32.totalorder %s185, %s187
      %p194 = scmp.eq.s32.totalorder %s30, 1
      %p195 = por %p193, %p194
      %p196 = scmp.ne.s32.totalorder %s187, %s188
      %p197 = scmp.eq.s32.totalorder %s30, 0
      %p198 = por %p196, %p197
      %p199 = scmp.ne.s32.totalorder %s187, %s188
      %p200 = scmp.eq.s32.totalorder %s31, 1
      %p201 = por %p199, %p200
      %p203 = scmp.ne.s32.totalorder %s188, %s202
      %p204 = scmp.eq.s32.totalorder %s31, 0
      %p205 = por %p203, %p204
      %s207 = sadd.s32 %s206, 1
      %p210 = scmp.eq.s32.totalorder %s25, 1
      %p211 = scmp.ne.s32.totalorder %s206, %s208
      %p212 = scmp.eq.s32.totalorder %s25, 0
      %p213 = por %p211, %p212
      %p214 = scmp.ne.s32.totalorder %s206, %s208
      %p215 = scmp.eq.s32.totalorder %s30, 1
      %p216 = por %p214, %p215
      %p217 = scmp.ne.s32.totalorder %s208, %s209
      %p218 = scmp.eq.s32.totalorder %s30, 0
      %p219 = por %p217, %p218
      %p220 = scmp.ne.s32.totalorder %s208, %s209
      %p221 = scmp.eq.s32.totalorder %s31, 1
      %p222 = por %p220, %p221
      %p224 = scmp.ne.s32.totalorder %s209, %s223
      %p225 = scmp.eq.s32.totalorder %s31, 0
      %p226 = por %p224, %p225
      %s227 = ssub.s32 %s32, %s44
      %s228 = ssub.s32 %s33, %s40
      %s229 = sor.u32 %s227, %s228
      %p230 = scmp.eq.s32.totalorder %s229, 0
      %s232 = sadd.s32 %s231, 1
      %s233 = scalar_select %p230, %s231, %s232
      %p236 = pneg %p230
      %p237 = scmp.eq.s32.totalorder %s25, 1
      %p238 = por %p236, %p237
      %p239 = scmp.ne.s32.totalorder %s231, %s234
      %p240 = scmp.eq.s32.totalorder %s25, 0
      %p241 = por %p239, %p240
      %p242 = scmp.ne.s32.totalorder %s231, %s234
      %p243 = scmp.eq.s32.totalorder %s30, 1
      %p244 = por %p242, %p243
      %p245 = scmp.ne.s32.totalorder %s234, %s235
      %p246 = scmp.eq.s32.totalorder %s30, 0
      %p247 = por %p245, %p246
      %p248 = scmp.ne.s32.totalorder %s234, %s235
      %p249 = scmp.eq.s32.totalorder %s31, 1
      %p250 = por %p248, %p249
      %p252 = scmp.ne.s32.totalorder %s235, %s251
      %p253 = scmp.eq.s32.totalorder %s31, 0
      %p254 = por %p252, %p253
      %p255 = scmp.le.s32.totalorder 1, %s25
      %p256 = scmp.lt.s32.totalorder %s25, 3
      %p257 = pnand %p255, %p256
      %p258 = pneg %p257
      // Predicated region
      $region9: #{tpu_custom_call.1} parent=5 // pred_check
        _
      $region10: #{tpu_custom_call.1} parent=5 // pred_check_branch
        %260 = sbr.rel (%p257) target = $region12
      $region11: #{tpu_custom_call.1} parent=5 // pred_region
        %s261 = ssub.s32 %s25, 1
        // Predicated region
        $region13: #{tpu_custom_call.1} parent=11 // pred_check
          %p262 = pneg %p114
        $region14: #{tpu_custom_call.1} parent=11 // pred_check_branch
          %264 = sbr.rel (%p262) target = $region16
        $region15: #{tpu_custom_call.1} parent=11 // pred_region
          _
        $region16: #{tpu_custom_call.1} parent=11 // pred_fallthru
          _
        // Predicated region
        $region17: #{tpu_custom_call.1} parent=11 // pred_check
          %p265 = pneg %p135
        $region18: #{tpu_custom_call.1} parent=11 // pred_check_branch
          %267 = sbr.rel (%p265) target = $region20
        $region19: #{tpu_custom_call.1} parent=11 // pred_region
          _
        $region20: #{tpu_custom_call.1} parent=11 // pred_fallthru
          _
        // Predicated region
        $region21: #{tpu_custom_call.1} parent=11 // pred_check
          %p268 = pneg %p156
        $region22: #{tpu_custom_call.1} parent=11 // pred_check_branch
          %270 = sbr.rel (%p268) target = $region24
        $region23: #{tpu_custom_call.1} parent=11 // pred_region
          %s272 = ssub.s32 512, 512
          %273 = vsyncadd [#allocation6], %s272
          %s274 = sshll.u32 [#allocation7], 4
          %s275 = int_to_ptr.vmem [resolvable:$true] %s274
          %280 = dma.hbm_to_vmem [thread:$0]  %s4, 512, %s275, [#allocation6], 128, 128, 8
        $region24: #{tpu_custom_call.1} parent=11 // pred_fallthru
          _
        // Predicated region
        $region25: #{tpu_custom_call.1} parent=11 // pred_check
          %p281 = pneg %p177
        $region26: #{tpu_custom_call.1} parent=11 // pred_check_branch
          %283 = sbr.rel (%p281) target = $region28
        $region27: #{tpu_custom_call.1} parent=11 // pred_region
          %s285 = ssub.s32 512, 512
          %286 = vsyncadd [#allocation9], %s285
          %s287 = sshll.u32 [#allocation8], 4
          %s288 = int_to_ptr.vmem [resolvable:$true] %s287
          %293 = dma.hbm_to_vmem [thread:$0]  %s5, 512, %s288, [#allocation9], 128, 128, 8
        $region28: #{tpu_custom_call.1} parent=11 // pred_fallthru
          _
        // Predicated region
        $region29: #{tpu_custom_call.1} parent=11 // pred_check
          %p294 = pneg %p198
        $region30: #{tpu_custom_call.1} parent=11 // pred_check_branch
          %296 = sbr.rel (%p294) target = $region32
        $region31: #{tpu_custom_call.1} parent=11 // pred_region
          %s298 = ssub.s32 512, 512
          %299 = vsyncadd [#allocation9], %s298
          %s300 = sshll.u32 [#allocation10], 4
          %s301 = int_to_ptr.vmem [resolvable:$true] %s300
          %306 = dma.hbm_to_vmem [thread:$0]  %s6, 512, %s301, [#allocation9], 128, 128, 8
        $region32: #{tpu_custom_call.1} parent=11 // pred_fallthru
          _
        // Predicated region
        $region33: #{tpu_custom_call.1} parent=11 // pred_check
          %p307 = pneg %p219
        $region34: #{tpu_custom_call.1} parent=11 // pred_check_branch
          %309 = sbr.rel (%p307) target = $region36
        $region35: #{tpu_custom_call.1} parent=11 // pred_region
          %s311 = ssub.s32 512, 512
          %312 = vsyncadd [#allocation12], %s311
          %s313 = sshll.u32 [#allocation11], 4
          %s314 = int_to_ptr.vmem [resolvable:$true] %s313
          %319 = dma.hbm_to_vmem [thread:$0]  %s7, 512, %s314, [#allocation12], 128, 128, 8
        $region36: #{tpu_custom_call.1} parent=11 // pred_fallthru
          _
      $region12: #{tpu_custom_call.1} parent=5 // pred_fallthru
        _
      %p320 = scmp.lt.s32.totalorder %s25, 2
      // Predicated region
      $region37: #{tpu_custom_call.1} parent=5 // pred_check
        %p321 = pneg %p320
      $region38: #{tpu_custom_call.1} parent=5 // pred_check_branch
        %323 = sbr.rel (%p321) target = $region40
      $region39: #{tpu_custom_call.1} parent=5 // pred_region
        // Predicated region
        $region41: #{tpu_custom_call.1} parent=39 // pred_check
          %p324 = pneg %p59
        $region42: #{tpu_custom_call.1} parent=39 // pred_check_branch
          %326 = sbr.rel (%p324) target = $region44
        $region43: #{tpu_custom_call.1} parent=39 // pred_region
          %s327 = sand.u32 %s49, 1
          %s328 = scalar_lea.sflag [#allocation3], %s327
          %s329 = sand.u32 %s49, 1
          %s330 = smul.addr %s329, 8
          %s331 = scalar_lea.vmem [#allocation2], %s330
          %s333 = ssub.s32 128, 128
          %334 = vsyncadd %s328, %s333
          %s335 = sadd.s32 %s33, %s32
          %s336 = smul.addr %s335, 128
          %s337 = scalar_lea.hbm %s0, %s336
          %s339 = sshll.u32 %s331, 4
          %s340 = int_to_ptr.vmem [resolvable:$true] %s339
          %342 = dma.hbm_to_vmem [thread:$0]  %s337, 128, %s340, %s328
        $region44: #{tpu_custom_call.1} parent=39 // pred_fallthru
          _
        // Predicated region
        $region45: #{tpu_custom_call.1} parent=39 // pred_check
          %p343 = pneg %p87
        $region46: #{tpu_custom_call.1} parent=39 // pred_check_branch
          %345 = sbr.rel (%p343) target = $region48
        $region47: #{tpu_custom_call.1} parent=39 // pred_region
          %s346 = sand.u32 %s25, 1
          %s347 = scalar_lea.sflag [#allocation6], %s346
          %s348 = sand.u32 %s77, 1
          %s349 = smul.addr %s348, 8
          %s350 = scalar_lea.vmem [#allocation5], %s349
          %s352 = ssub.s32 128, 128
          %353 = vsyncadd %s347, %s352
          %s354 = sadd.s32 %s33, %s32
          %s355 = smul.addr %s354, 128
          %s356 = scalar_lea.hbm %s1, %s355
          %s358 = sshll.u32 %s350, 4
          %s359 = int_to_ptr.vmem [resolvable:$true] %s358
          %361 = dma.hbm_to_vmem [thread:$0]  %s356, 128, %s359, %s347
        $region48: #{tpu_custom_call.1} parent=39 // pred_fallthru
          _
      $region40: #{tpu_custom_call.1} parent=5 // pred_fallthru
        _
      %p362 = scmp.le.s32.totalorder 1, %s25
      %p363 = scmp.lt.s32.totalorder %s25, 3
      %p364 = pnand %p362, %p363
      %p365 = pneg %p364
      // Predicated region
      $region49: #{tpu_custom_call.1} parent=5 // pred_check
        _
      $region50: #{tpu_custom_call.1} parent=5 // pred_check_branch
        %367 = sbr.rel (%p364) target = $region52
      $region51: #{tpu_custom_call.1} parent=5 // pred_region
        %s368 = ssub.s32 %s25, 1
        %s369 = sand.u32 %s52, 1
        %s370 = scalar_lea.sflag [#allocation3], %s369
        %s371 = sand.u32 %s52, 1
        %s372 = smul.addr %s371, 8
        %s373 = scalar_lea.vmem [#allocation2], %s372
        // Predicated region
        $region53: #{tpu_custom_call.1} parent=51 // pred_check
          %p374 = pneg %p65
        $region54: #{tpu_custom_call.1} parent=51 // pred_check_branch
          %376 = sbr.rel (%p374) target = $region56
        $region55: #{tpu_custom_call.1} parent=51 // pred_region
          %377 = dma.done %s370, 128
        $region56: #{tpu_custom_call.1} parent=51 // pred_fallthru
          _
        %s378 = sand.u32 %s30, 1
        %s379 = scalar_lea.sflag [#allocation6], %s378
        %s380 = sand.u32 %s80, 1
        %s381 = smul.addr %s380, 8
        %s382 = scalar_lea.vmem [#allocation5], %s381
        // Predicated region
        $region57: #{tpu_custom_call.1} parent=51 // pred_check
          %p383 = pneg %p93
        $region58: #{tpu_custom_call.1} parent=51 // pred_check_branch
          %385 = sbr.rel (%p383) target = $region60
        $region59: #{tpu_custom_call.1} parent=51 // pred_region
          %386 = dma.done %s379, 128
        $region60: #{tpu_custom_call.1} parent=51 // pred_fallthru
          _
        // Predicated region
        $region61: #{tpu_custom_call.1} parent=51 // pred_check
          %p387 = pneg %p156
        $region62: #{tpu_custom_call.1} parent=51 // pred_check_branch
          %389 = sbr.rel (%p387) target = $region64
        $region63: #{tpu_custom_call.1} parent=51 // pred_region
          %390 = dma.done [#allocation6], 512
        $region64: #{tpu_custom_call.1} parent=51 // pred_fallthru
          _
        // Predicated region
        $region65: #{tpu_custom_call.1} parent=51 // pred_check
          %p391 = pneg %p177
        $region66: #{tpu_custom_call.1} parent=51 // pred_check_branch
          %393 = sbr.rel (%p391) target = $region68
        $region67: #{tpu_custom_call.1} parent=51 // pred_region
          %394 = dma.done [#allocation9], 512
        $region68: #{tpu_custom_call.1} parent=51 // pred_fallthru
          _
        // Predicated region
        $region69: #{tpu_custom_call.1} parent=51 // pred_check
          %p395 = pneg %p198
        $region70: #{tpu_custom_call.1} parent=51 // pred_check_branch
          %397 = sbr.rel (%p395) target = $region72
        $region71: #{tpu_custom_call.1} parent=51 // pred_region
          %398 = dma.done [#allocation9], 512
        $region72: #{tpu_custom_call.1} parent=51 // pred_fallthru
          _
        // Predicated region
        $region73: #{tpu_custom_call.1} parent=51 // pred_check
          %p399 = pneg %p219
        $region74: #{tpu_custom_call.1} parent=51 // pred_check_branch
          %401 = sbr.rel (%p399) target = $region76
        $region75: #{tpu_custom_call.1} parent=51 // pred_region
          %402 = dma.done [#allocation12], 512
        $region76: #{tpu_custom_call.1} parent=51 // pred_fallthru
          _
        %s403 = sand.u32 %s52, 1
        %s404 = scalar_lea.sflag [#allocation3], %s403
        %s405 = sand.u32 %s52, 1
        %s406 = smul.addr %s405, 8
        %s407 = scalar_lea.vmem [#allocation2], %s406
        %p408 = pneg %p65
        %p409 = pneg %p62
        %s410 = sand.u32 %s30, 1
        %s411 = scalar_lea.sflag [#allocation6], %s410
        %s412 = sand.u32 %s80, 1
        %s413 = smul.addr %s412, 8
        %s414 = scalar_lea.vmem [#allocation5], %s413
        %p415 = pneg %p93
        %p416 = pneg %p90
        %p417 = pneg %p114
        %p418 = pneg %p111
        %p419 = pneg %p135
        %p420 = pneg %p132
        %p421 = pneg %p156
        %p422 = pneg %p153
        %p423 = pneg %p177
        %p424 = pneg %p174
        %p425 = pneg %p198
        %p426 = pneg %p195
        %p427 = pneg %p219
        %p428 = pneg %p216
        %p429 = pneg %p247
        %p430 = pneg %p244
        %s431 = sand.u32 %s234, 1
        %s432 = scalar_lea.sflag [#allocation4], %s431
        %s433 = sand.u32 %s234, 1
        %s434 = smul.addr %s433, 8
        %s435 = scalar_lea.vmem [#allocation13], %s434
        %v436 = vld [vmem:[%s373] sm:$0xff]
        %v437 = vld [vmem:[%s382] sm:$0xff]
        %v438 = vld [vmem:[%s2] sm:$0x1]
        %v439 = vld [vmem:[%s3] sm:$0x1]
        %vm440 = vcmask 261120
        %v441 = vsel %vm440, %v436, 0.0
        %442 = vadd.xlane.f32.xlu0 %v441
        %v443 = vpop.xlane.xlu0 %442
        %v444 = vrcp.pop 32.0
        %v445 = vmul.f32 %v443, %v444
        %v446 = vsub.f32 %v436, %v445
        %v447 = vmul.f32 %v446, %v446
        %v448 = vsel %vm440, %v447, 0.0
        %449 = vadd.xlane.f32.xlu0 %v448
        %v450 = vpop.xlane.xlu0 %449
        %v451 = vrcp.pop 31.0
        %v452 = vmul.f32 %v450, %v451
        %v453 = vrsqrt.pop %v452
        %v454 = vmul.f32 %v452, %v453
        %vm455 = vcmp.eq.f32.partialorder %v452, inf
        %v456 = vsel %vm455, %v452, %v454
        %vm457 = vcmp.eq.f32.partialorder %v452, 0.0
        %v458 = vand.u32 %v452, 2147483648
        %v459 = vsel %vm457, %v458, %v456
        %v461 = vlaneseq
        %v462 = vshrl.u32 %v461, 7
        %v463 = vsub.s32 0, %v462
        %v464 = vrot.slane %v438, %v463
        %v466 = vmul.f32 %v464, %v446
        %v467 = vadd.f32 %v459, 1e-06
        %v468 = vrcp.pop %v467
        %v469 = vmul.f32 %v466, %v468
        %v471 = vlaneseq
        %v472 = vshrl.u32 %v471, 7
        %v473 = vsub.s32 0, %v472
        %v474 = vrot.slane %v439, %v473
        %v476 = vadd.f32 %v469, %v474
        %v477 = vld [vmem:[#allocation7] sm:$0xff]
        %v478 = vld [vmem:[#allocation8] sm:$0xff]
        %v479 = vld [vmem:[#allocation10] sm:$0xff]
        %v480 = vld [vmem:[#allocation11] sm:$0xff]
        %v482 = vsel %vm440, %v476, 0
        %v485 = vsel %vm440, %v477, 0
        %487 = vmatprep.subr.mxu0 0.0
        %488 = vmatpush1.xpose.msra.mxu0 %v485
        %489 = vmatprep.subr.mxu0 0.0
        %490 = vmatpush1.xpose.msra.mxu0 0.0
        %491 = vmatprep.subr.mxu0 0.0
        %492 = vmatpush1.xpose.msra.mxu0 0.0
        %493 = vmatprep.subr.mxu0 0.0
        %494 = vmatpush1.xpose.msra.mxu0 0.0
        %495 = vmatprep.subr.mxu0 0.0
        %496 = vmatpush1.xpose.msra.mxu0 0.0
        %497 = vmatprep.subr.mxu0 0.0
        %498 = vmatpush1.xpose.msra.mxu0 0.0
        %499 = vmatprep.subr.mxu0 0.0
        %500 = vmatpush1.xpose.msra.mxu0 0.0
        %501 = vmatprep.subr.mxu0 0.0
        %502 = vmatpush1.xpose.msra.mxu0 0.0
        %503 = vmatprep.subr.mxu0 0.0
        %504 = vmatpush1.xpose.msra.mxu0 0.0
        %505 = vmatprep.subr.mxu0 0.0
        %506 = vmatpush1.xpose.msra.mxu0 0.0
        %507 = vmatprep.subr.mxu0 0.0
        %508 = vmatpush1.xpose.msra.mxu0 0.0
        %509 = vmatprep.subr.mxu0 0.0
        %510 = vmatpush1.xpose.msra.mxu0 0.0
        %511 = vmatprep.subr.mxu0 0.0
        %512 = vmatpush1.xpose.msra.mxu0 0.0
        %513 = vmatprep.subr.mxu0 0.0
        %514 = vmatpush1.xpose.msra.mxu0 0.0
        %515 = vmatprep.subr.mxu0 0.0
        %516 = vmatpush1.xpose.msra.mxu0 0.0
        %517 = vmatprep.subr.mxu0 0.0
        %518 = vmatpush1.xpose.msra.mxu0 0.0
        %519 = vmatprep.subr.mxu0 0.0
        %520 = vmatpush1.xpose.msra.mxu0 0.0
        %521 = vmatprep.subr.mxu0 0.0
        %522 = vmatpush1.xpose.msra.mxu0 0.0
        %523 = vmatprep.subr.mxu0 0.0
        %524 = vmatpush1.xpose.msra.mxu0 0.0
        %525 = vmatprep.subr.mxu0 0.0
        %526 = vmatpush1.xpose.msra.mxu0 0.0
        %527 = vmatprep.subr.mxu0 0.0
        %528 = vmatpush1.xpose.msra.mxu0 0.0
        %529 = vmatprep.subr.mxu0 0.0
        %530 = vmatpush1.xpose.msra.mxu0 0.0
        %531 = vmatprep.subr.mxu0 0.0
        %532 = vmatpush1.xpose.msra.mxu0 0.0
        %533 = vmatprep.subr.mxu0 0.0
        %534 = vmatpush1.xpose.msra.mxu0 0.0
        %535 = vmatprep.subr.mxu0 0.0
        %536 = vmatpush1.xpose.msra.mxu0 0.0
        %537 = vmatprep.subr.mxu0 0.0
        %538 = vmatpush1.xpose.msra.mxu0 0.0
        %539 = vmatprep.subr.mxu0 0.0
        %540 = vmatpush1.xpose.msra.mxu0 0.0
        %541 = vmatprep.subr.mxu0 0.0
        %542 = vmatpush1.xpose.msra.mxu0 0.0
        %543 = vmatprep.subr.mxu0 0.0
        %544 = vmatpush1.xpose.msra.mxu0 0.0
        %545 = vmatprep.subr.mxu0 0.0
        %546 = vmatpush1.xpose.msra.mxu0 0.0
        %547 = vmatprep.subr.mxu0 0.0
        %548 = vmatpush1.xpose.msra.mxu0 0.0
        %549 = vmatprep.subr.mxu0 0.0
        %550 = vmatpush1.xpose.msra.mxu0 0.0
        %551 = vmatprep.mubr.f32.mxu0 0.0
        %552 = vmatmul.mubr.f32.gmra.mrb[0].mxu0 %v482
        %v553 = vpop.f32.mrb[0].mxu0
        %v554 = vadd.f32 0.0, %v553
        %v555 = vpop.f32.mrb[0].mxu0
        %556 = vdwg.mxu0
        %v558 = vsel %vm440, %v478, 0
        %560 = vmatprep.subr.mxu0 0.0
        %561 = vmatpush1.xpose.msra.mxu0 %v558
        %562 = vmatprep.subr.mxu0 0.0
        %563 = vmatpush1.xpose.msra.mxu0 0.0
        %564 = vmatprep.subr.mxu0 0.0
        %565 = vmatpush1.xpose.msra.mxu0 0.0
        %566 = vmatprep.subr.mxu0 0.0
        %567 = vmatpush1.xpose.msra.mxu0 0.0
        %568 = vmatprep.subr.mxu0 0.0
        %569 = vmatpush1.xpose.msra.mxu0 0.0
        %570 = vmatprep.subr.mxu0 0.0
        %571 = vmatpush1.xpose.msra.mxu0 0.0
        %572 = vmatprep.subr.mxu0 0.0
        %573 = vmatpush1.xpose.msra.mxu0 0.0
        %574 = vmatprep.subr.mxu0 0.0
        %575 = vmatpush1.xpose.msra.mxu0 0.0
        %576 = vmatprep.subr.mxu0 0.0
        %577 = vmatpush1.xpose.msra.mxu0 0.0
        %578 = vmatprep.subr.mxu0 0.0
        %579 = vmatpush1.xpose.msra.mxu0 0.0
        %580 = vmatprep.subr.mxu0 0.0
        %581 = vmatpush1.xpose.msra.mxu0 0.0
        %582 = vmatprep.subr.mxu0 0.0
        %583 = vmatpush1.xpose.msra.mxu0 0.0
        %584 = vmatprep.subr.mxu0 0.0
        %585 = vmatpush1.xpose.msra.mxu0 0.0
        %586 = vmatprep.subr.mxu0 0.0
        %587 = vmatpush1.xpose.msra.mxu0 0.0
        %588 = vmatprep.subr.mxu0 0.0
        %589 = vmatpush1.xpose.msra.mxu0 0.0
        %590 = vmatprep.subr.mxu0 0.0
        %591 = vmatpush1.xpose.msra.mxu0 0.0
        %592 = vmatprep.subr.mxu0 0.0
        %593 = vmatpush1.xpose.msra.mxu0 0.0
        %594 = vmatprep.subr.mxu0 0.0
        %595 = vmatpush1.xpose.msra.mxu0 0.0
        %596 = vmatprep.subr.mxu0 0.0
        %597 = vmatpush1.xpose.msra.mxu0 0.0
        %598 = vmatprep.subr.mxu0 0.0
        %599 = vmatpush1.xpose.msra.mxu0 0.0
        %600 = vmatprep.subr.mxu0 0.0
        %601 = vmatpush1.xpose.msra.mxu0 0.0
        %602 = vmatprep.subr.mxu0 0.0
        %603 = vmatpush1.xpose.msra.mxu0 0.0
        %604 = vmatprep.subr.mxu0 0.0
        %605 = vmatpush1.xpose.msra.mxu0 0.0
        %606 = vmatprep.subr.mxu0 0.0
        %607 = vmatpush1.xpose.msra.mxu0 0.0
        %608 = vmatprep.subr.mxu0 0.0
        %609 = vmatpush1.xpose.msra.mxu0 0.0
        %610 = vmatprep.subr.mxu0 0.0
        %611 = vmatpush1.xpose.msra.mxu0 0.0
        %612 = vmatprep.subr.mxu0 0.0
        %613 = vmatpush1.xpose.msra.mxu0 0.0
        %614 = vmatprep.subr.mxu0 0.0
        %615 = vmatpush1.xpose.msra.mxu0 0.0
        %616 = vmatprep.subr.mxu0 0.0
        %617 = vmatpush1.xpose.msra.mxu0 0.0
        %618 = vmatprep.subr.mxu0 0.0
        %619 = vmatpush1.xpose.msra.mxu0 0.0
        %620 = vmatprep.subr.mxu0 0.0
        %621 = vmatpush1.xpose.msra.mxu0 0.0
        %622 = vmatprep.subr.mxu0 0.0
        %623 = vmatpush1.xpose.msra.mxu0 0.0
        %624 = vmatprep.mubr.f32.mxu0 0.0
        %625 = vmatmul.mubr.f32.gmra.mrb[0].mxu0 %v482
        %v626 = vpop.f32.mrb[0].mxu0
        %v627 = vadd.f32 0.0, %v626
        %v628 = vpop.f32.mrb[0].mxu0
        %629 = vdwg.mxu0
        %v631 = vsel %vm440, %v479, 0
        %633 = vmatprep.subr.mxu0 0.0
        %634 = vmatpush1.xpose.msra.mxu0 %v631
        %635 = vmatprep.subr.mxu0 0.0
        %636 = vmatpush1.xpose.msra.mxu0 0.0
        %637 = vmatprep.subr.mxu0 0.0
        %638 = vmatpush1.xpose.msra.mxu0 0.0
        %639 = vmatprep.subr.mxu0 0.0
        %640 = vmatpush1.xpose.msra.mxu0 0.0
        %641 = vmatprep.subr.mxu0 0.0
        %642 = vmatpush1.xpose.msra.mxu0 0.0
        %643 = vmatprep.subr.mxu0 0.0
        %644 = vmatpush1.xpose.msra.mxu0 0.0
        %645 = vmatprep.subr.mxu0 0.0
        %646 = vmatpush1.xpose.msra.mxu0 0.0
        %647 = vmatprep.subr.mxu0 0.0
        %648 = vmatpush1.xpose.msra.mxu0 0.0
        %649 = vmatprep.subr.mxu0 0.0
        %650 = vmatpush1.xpose.msra.mxu0 0.0
        %651 = vmatprep.subr.mxu0 0.0
        %652 = vmatpush1.xpose.msra.mxu0 0.0
        %653 = vmatprep.subr.mxu0 0.0
        %654 = vmatpush1.xpose.msra.mxu0 0.0
        %655 = vmatprep.subr.mxu0 0.0
        %656 = vmatpush1.xpose.msra.mxu0 0.0
        %657 = vmatprep.subr.mxu0 0.0
        %658 = vmatpush1.xpose.msra.mxu0 0.0
        %659 = vmatprep.subr.mxu0 0.0
        %660 = vmatpush1.xpose.msra.mxu0 0.0
        %661 = vmatprep.subr.mxu0 0.0
        %662 = vmatpush1.xpose.msra.mxu0 0.0
        %663 = vmatprep.subr.mxu0 0.0
        %664 = vmatpush1.xpose.msra.mxu0 0.0
        %665 = vmatprep.subr.mxu0 0.0
        %666 = vmatpush1.xpose.msra.mxu0 0.0
        %667 = vmatprep.subr.mxu0 0.0
        %668 = vmatpush1.xpose.msra.mxu0 0.0
        %669 = vmatprep.subr.mxu0 0.0
        %670 = vmatpush1.xpose.msra.mxu0 0.0
        %671 = vmatprep.subr.mxu0 0.0
        %672 = vmatpush1.xpose.msra.mxu0 0.0
        %673 = vmatprep.subr.mxu0 0.0
        %674 = vmatpush1.xpose.msra.mxu0 0.0
        %675 = vmatprep.subr.mxu0 0.0
        %676 = vmatpush1.xpose.msra.mxu0 0.0
        %677 = vmatprep.subr.mxu0 0.0
        %678 = vmatpush1.xpose.msra.mxu0 0.0
        %679 = vmatprep.subr.mxu0 0.0
        %680 = vmatpush1.xpose.msra.mxu0 0.0
        %681 = vmatprep.subr.mxu0 0.0
        %682 = vmatpush1.xpose.msra.mxu0 0.0
        %683 = vmatprep.subr.mxu0 0.0
        %684 = vmatpush1.xpose.msra.mxu0 0.0
        %685 = vmatprep.subr.mxu0 0.0
        %686 = vmatpush1.xpose.msra.mxu0 0.0
        %687 = vmatprep.subr.mxu0 0.0
        %688 = vmatpush1.xpose.msra.mxu0 0.0
        %689 = vmatprep.subr.mxu0 0.0
        %690 = vmatpush1.xpose.msra.mxu0 0.0
        %691 = vmatprep.subr.mxu0 0.0
        %692 = vmatpush1.xpose.msra.mxu0 0.0
        %693 = vmatprep.subr.mxu0 0.0
        %694 = vmatpush1.xpose.msra.mxu0 0.0
        %695 = vmatprep.subr.mxu0 0.0
        %696 = vmatpush1.xpose.msra.mxu0 0.0
        %697 = vmatprep.mubr.f32.mxu0 0.0
        %698 = vmatmul.mubr.f32.gmra.mrb[0].mxu0 %v482
        %v699 = vpop.f32.mrb[0].mxu0
        %v700 = vadd.f32 0.0, %v699
        %v701 = vpop.f32.mrb[0].mxu0
        %702 = vdwg.mxu0
        %vm703 = vcmask 64512
        %v705 = vsel %vm703, %v554, 0
        %v708 = vsel %vm703, %v627, 0
        %710 = vmatprep.subr.mxu0 0.0
        %711 = vmatpush1.xpose.msra.mxu0 %v708
        %712 = vmatprep.subr.mxu0 0.0
        %713 = vmatpush1.xpose.msra.mxu0 0.0
        %714 = vmatprep.subr.mxu0 0.0
        %715 = vmatpush1.xpose.msra.mxu0 0.0
        %716 = vmatprep.subr.mxu0 0.0
        %717 = vmatpush1.xpose.msra.mxu0 0.0
        %718 = vmatprep.subr.mxu0 0.0
        %719 = vmatpush1.xpose.msra.mxu0 0.0
        %720 = vmatprep.subr.mxu0 0.0
        %721 = vmatpush1.xpose.msra.mxu0 0.0
        %722 = vmatprep.subr.mxu0 0.0
        %723 = vmatpush1.xpose.msra.mxu0 0.0
        %724 = vmatprep.subr.mxu0 0.0
        %725 = vmatpush1.xpose.msra.mxu0 0.0
        %726 = vmatprep.subr.mxu0 0.0
        %727 = vmatpush1.xpose.msra.mxu0 0.0
        %728 = vmatprep.subr.mxu0 0.0
        %729 = vmatpush1.xpose.msra.mxu0 0.0
        %730 = vmatprep.subr.mxu0 0.0
        %731 = vmatpush1.xpose.msra.mxu0 0.0
        %732 = vmatprep.subr.mxu0 0.0
        %733 = vmatpush1.xpose.msra.mxu0 0.0
        %734 = vmatprep.subr.mxu0 0.0
        %735 = vmatpush1.xpose.msra.mxu0 0.0
        %736 = vmatprep.subr.mxu0 0.0
        %737 = vmatpush1.xpose.msra.mxu0 0.0
        %738 = vmatprep.subr.mxu0 0.0
        %739 = vmatpush1.xpose.msra.mxu0 0.0
        %740 = vmatprep.subr.mxu0 0.0
        %741 = vmatpush1.xpose.msra.mxu0 0.0
        %742 = vmatprep.subr.mxu0 0.0
        %743 = vmatpush1.xpose.msra.mxu0 0.0
        %744 = vmatprep.subr.mxu0 0.0
        %745 = vmatpush1.xpose.msra.mxu0 0.0
        %746 = vmatprep.subr.mxu0 0.0
        %747 = vmatpush1.xpose.msra.mxu0 0.0
        %748 = vmatprep.subr.mxu0 0.0
        %749 = vmatpush1.xpose.msra.mxu0 0.0
        %750 = vmatprep.subr.mxu0 0.0
        %751 = vmatpush1.xpose.msra.mxu0 0.0
        %752 = vmatprep.subr.mxu0 0.0
        %753 = vmatpush1.xpose.msra.mxu0 0.0
        %754 = vmatprep.subr.mxu0 0.0
        %755 = vmatpush1.xpose.msra.mxu0 0.0
        %756 = vmatprep.subr.mxu0 0.0
        %757 = vmatpush1.xpose.msra.mxu0 0.0
        %758 = vmatprep.subr.mxu0 0.0
        %759 = vmatpush1.xpose.msra.mxu0 0.0
        %760 = vmatprep.subr.mxu0 0.0
        %761 = vmatpush1.xpose.msra.mxu0 0.0
        %762 = vmatprep.subr.mxu0 0.0
        %763 = vmatpush1.xpose.msra.mxu0 0.0
        %764 = vmatprep.subr.mxu0 0.0
        %765 = vmatpush1.xpose.msra.mxu0 0.0
        %766 = vmatprep.subr.mxu0 0.0
        %767 = vmatpush1.xpose.msra.mxu0 0.0
        %768 = vmatprep.subr.mxu0 0.0
        %769 = vmatpush1.xpose.msra.mxu0 0.0
        %770 = vmatprep.subr.mxu0 0.0
        %771 = vmatpush1.xpose.msra.mxu0 0.0
        %772 = vmatprep.subr.mxu0 0.0
        %773 = vmatpush1.xpose.msra.mxu0 0.0
        %774 = vmatprep.mubr.f32.mxu0 0.0
        %775 = vmatmul.mubr.f32.gmra.mrb[0].mxu0 %v705
        %v776 = vpop.f32.mrb[0].mxu0
        %v777 = vadd.f32 %v437, %v776
        %v778 = vpop.f32.mrb[0].mxu0
        %779 = vdwg.mxu0
        %v780 = vsel %vm703, %v777, -inf
        %781 = vmax.xlane.f32.xlu0 %v780
        %v782 = vpop.xlane.xlu0 %781
        %v783 = vsub.f32 %v777, %v782
        %v784 = vmul.f32 %v783, 1.442695
        %v785 = vpow.pop %v784
        %v786 = vsel %vm703, %v785, 0.0
        %787 = vadd.xlane.f32.xlu0 %v786
        %v788 = vpop.xlane.xlu0 %787
        %v789 = vrcp.pop %v788
        %v791 = vsel %vm703, %v785, 0
        %793 = vmatprep.subr.mxu0 0.0
        %794 = vmatpush1.msra.mxu0 %v700
        %795 = vmatprep.subr.mxu0 0.0
        %796 = vmatpush1.msra.mxu0 0.0
        %797 = vmatprep.subr.mxu0 0.0
        %798 = vmatpush1.msra.mxu0 0.0
        %799 = vmatprep.subr.mxu0 0.0
        %800 = vmatpush1.msra.mxu0 0.0
        %801 = vmatprep.subr.mxu0 0.0
        %802 = vmatpush1.msra.mxu0 0.0
        %803 = vmatprep.subr.mxu0 0.0
        %804 = vmatpush1.msra.mxu0 0.0
        %805 = vmatprep.subr.mxu0 0.0
        %806 = vmatpush1.msra.mxu0 0.0
        %807 = vmatprep.subr.mxu0 0.0
        %808 = vmatpush1.msra.mxu0 0.0
        %809 = vmatprep.subr.mxu0 0.0
        %810 = vmatpush1.msra.mxu0 0.0
        %811 = vmatprep.subr.mxu0 0.0
        %812 = vmatpush1.msra.mxu0 0.0
        %813 = vmatprep.subr.mxu0 0.0
        %814 = vmatpush1.msra.mxu0 0.0
        %815 = vmatprep.subr.mxu0 0.0
        %816 = vmatpush1.msra.mxu0 0.0
        %817 = vmatprep.subr.mxu0 0.0
        %818 = vmatpush1.msra.mxu0 0.0
        %819 = vmatprep.subr.mxu0 0.0
        %820 = vmatpush1.msra.mxu0 0.0
        %821 = vmatprep.subr.mxu0 0.0
        %822 = vmatpush1.msra.mxu0 0.0
        %823 = vmatprep.subr.mxu0 0.0
        %824 = vmatpush1.msra.mxu0 0.0
        %825 = vmatprep.subr.mxu0 0.0
        %826 = vmatpush1.msra.mxu0 0.0
        %827 = vmatprep.subr.mxu0 0.0
        %828 = vmatpush1.msra.mxu0 0.0
        %829 = vmatprep.subr.mxu0 0.0
        %830 = vmatpush1.msra.mxu0 0.0
        %831 = vmatprep.subr.mxu0 0.0
        %832 = vmatpush1.msra.mxu0 0.0
        %833 = vmatprep.subr.mxu0 0.0
        %834 = vmatpush1.msra.mxu0 0.0
        %835 = vmatprep.subr.mxu0 0.0
        %836 = vmatpush1.msra.mxu0 0.0
        %837 = vmatprep.subr.mxu0 0.0
        %838 = vmatpush1.msra.mxu0 0.0
        %839 = vmatprep.subr.mxu0 0.0
        %840 = vmatpush1.msra.mxu0 0.0
        %841 = vmatprep.subr.mxu0 0.0
        %842 = vmatpush1.msra.mxu0 0.0
        %843 = vmatprep.subr.mxu0 0.0
        %844 = vmatpush1.msra.mxu0 0.0
        %845 = vmatprep.subr.mxu0 0.0
        %846 = vmatpush1.msra.mxu0 0.0
        %847 = vmatprep.subr.mxu0 0.0
        %848 = vmatpush1.msra.mxu0 0.0
        %849 = vmatprep.subr.mxu0 0.0
        %850 = vmatpush1.msra.mxu0 0.0
        %851 = vmatprep.subr.mxu0 0.0
        %852 = vmatpush1.msra.mxu0 0.0
        %853 = vmatprep.subr.mxu0 0.0
        %854 = vmatpush1.msra.mxu0 0.0
        %855 = vmatprep.subr.mxu0 0.0
        %856 = vmatpush1.msra.mxu0 0.0
        %857 = vmatprep.mubr.f32.mxu0 0.0
        %858 = vmatmul.mubr.f32.gmra.mrb[0].mxu0 %v791
        %v859 = vpop.f32.mrb[0].mxu0
        %v860 = vadd.f32 0.0, %v859
        %v861 = vpop.f32.mrb[0].mxu0
        %862 = vdwg.mxu0
        %v863 = vmul.f32 %v860, %v789
        %v865 = vsel %vm703, %v863, 0
        %867 = vmatprep.subr.mxu0 0.0
        %868 = vmatpush1.msra.mxu0 %v480
        %869 = vmatprep.subr.mxu0 0.0
        %870 = vmatpush1.msra.mxu0 0.0
        %871 = vmatprep.subr.mxu0 0.0
        %872 = vmatpush1.msra.mxu0 0.0
        %873 = vmatprep.subr.mxu0 0.0
        %874 = vmatpush1.msra.mxu0 0.0
        %875 = vmatprep.subr.mxu0 0.0
        %876 = vmatpush1.msra.mxu0 0.0
        %877 = vmatprep.subr.mxu0 0.0
        %878 = vmatpush1.msra.mxu0 0.0
        %879 = vmatprep.subr.mxu0 0.0
        %880 = vmatpush1.msra.mxu0 0.0
        %881 = vmatprep.subr.mxu0 0.0
        %882 = vmatpush1.msra.mxu0 0.0
        %883 = vmatprep.subr.mxu0 0.0
        %884 = vmatpush1.msra.mxu0 0.0
        %885 = vmatprep.subr.mxu0 0.0
        %886 = vmatpush1.msra.mxu0 0.0
        %887 = vmatprep.subr.mxu0 0.0
        %888 = vmatpush1.msra.mxu0 0.0
        %889 = vmatprep.subr.mxu0 0.0
        %890 = vmatpush1.msra.mxu0 0.0
        %891 = vmatprep.subr.mxu0 0.0
        %892 = vmatpush1.msra.mxu0 0.0
        %893 = vmatprep.subr.mxu0 0.0
        %894 = vmatpush1.msra.mxu0 0.0
        %895 = vmatprep.subr.mxu0 0.0
        %896 = vmatpush1.msra.mxu0 0.0
        %897 = vmatprep.subr.mxu0 0.0
        %898 = vmatpush1.msra.mxu0 0.0
        %899 = vmatprep.subr.mxu0 0.0
        %900 = vmatpush1.msra.mxu0 0.0
        %901 = vmatprep.subr.mxu0 0.0
        %902 = vmatpush1.msra.mxu0 0.0
        %903 = vmatprep.subr.mxu0 0.0
        %904 = vmatpush1.msra.mxu0 0.0
        %905 = vmatprep.subr.mxu0 0.0
        %906 = vmatpush1.msra.mxu0 0.0
        %907 = vmatprep.subr.mxu0 0.0
        %908 = vmatpush1.msra.mxu0 0.0
        %909 = vmatprep.subr.mxu0 0.0
        %910 = vmatpush1.msra.mxu0 0.0
        %911 = vmatprep.subr.mxu0 0.0
        %912 = vmatpush1.msra.mxu0 0.0
        %913 = vmatprep.subr.mxu0 0.0
        %914 = vmatpush1.msra.mxu0 0.0
        %915 = vmatprep.subr.mxu0 0.0
        %916 = vmatpush1.msra.mxu0 0.0
        %917 = vmatprep.subr.mxu0 0.0
        %918 = vmatpush1.msra.mxu0 0.0
        %919 = vmatprep.subr.mxu0 0.0
        %920 = vmatpush1.msra.mxu0 0.0
        %921 = vmatprep.subr.mxu0 0.0
        %922 = vmatpush1.msra.mxu0 0.0
        %923 = vmatprep.subr.mxu0 0.0
        %924 = vmatpush1.msra.mxu0 0.0
        %925 = vmatprep.subr.mxu0 0.0
        %926 = vmatpush1.msra.mxu0 0.0
        %927 = vmatprep.subr.mxu0 0.0
        %928 = vmatpush1.msra.mxu0 0.0
        %929 = vmatprep.subr.mxu0 0.0
        %930 = vmatpush1.msra.mxu0 0.0
        %931 = vmatprep.mubr.f32.mxu0 0.0
        %932 = vmatmul.mubr.f32.gmra.mrb[0].mxu0 %v865
        %v933 = vpop.f32.mrb[0].mxu0
        %v934 = vadd.f32 0.0, %v933
        %v935 = vpop.f32.mrb[0].mxu0
        %936 = vdwg.mxu0
        %v937 = vadd.f32 %v436, %v934
        %s938 = scalar_lea.vmem [#allocation7], 8
        %v939 = vld [vmem:[%s938] sm:$0xff]
        %s940 = scalar_lea.vmem [#allocation8], 8
        %v941 = vld [vmem:[%s940] sm:$0xff]
        %s942 = scalar_lea.vmem [#allocation10], 8
        %v943 = vld [vmem:[%s942] sm:$0xff]
        %s944 = scalar_lea.vmem [#allocation11], 8
        %v945 = vld [vmem:[%s944] sm:$0xff]
        %v947 = vsel %vm440, %v939, 0
        %949 = vmatprep.subr.mxu0 0.0
        %950 = vmatpush1.xpose.msra.mxu0 %v947
        %951 = vmatprep.subr.mxu0 0.0
        %952 = vmatpush1.xpose.msra.mxu0 0.0
        %953 = vmatprep.subr.mxu0 0.0
        %954 = vmatpush1.xpose.msra.mxu0 0.0
        %955 = vmatprep.subr.mxu0 0.0
        %956 = vmatpush1.xpose.msra.mxu0 0.0
        %957 = vmatprep.subr.mxu0 0.0
        %958 = vmatpush1.xpose.msra.mxu0 0.0
        %959 = vmatprep.subr.mxu0 0.0
        %960 = vmatpush1.xpose.msra.mxu0 0.0
        %961 = vmatprep.subr.mxu0 0.0
        %962 = vmatpush1.xpose.msra.mxu0 0.0
        %963 = vmatprep.subr.mxu0 0.0
        %964 = vmatpush1.xpose.msra.mxu0 0.0
        %965 = vmatprep.subr.mxu0 0.0
        %966 = vmatpush1.xpose.msra.mxu0 0.0
        %967 = vmatprep.subr.mxu0 0.0
        %968 = vmatpush1.xpose.msra.mxu0 0.0
        %969 = vmatprep.subr.mxu0 0.0
        %970 = vmatpush1.xpose.msra.mxu0 0.0
        %971 = vmatprep.subr.mxu0 0.0
        %972 = vmatpush1.xpose.msra.mxu0 0.0
        %973 = vmatprep.subr.mxu0 0.0
        %974 = vmatpush1.xpose.msra.mxu0 0.0
        %975 = vmatprep.subr.mxu0 0.0
        %976 = vmatpush1.xpose.msra.mxu0 0.0
        %977 = vmatprep.subr.mxu0 0.0
        %978 = vmatpush1.xpose.msra.mxu0 0.0
        %979 = vmatprep.subr.mxu0 0.0
        %980 = vmatpush1.xpose.msra.mxu0 0.0
        %981 = vmatprep.subr.mxu0 0.0
        %982 = vmatpush1.xpose.msra.mxu0 0.0
        %983 = vmatprep.subr.mxu0 0.0
        %984 = vmatpush1.xpose.msra.mxu0 0.0
        %985 = vmatprep.subr.mxu0 0.0
        %986 = vmatpush1.xpose.msra.mxu0 0.0
        %987 = vmatprep.subr.mxu0 0.0
        %988 = vmatpush1.xpose.msra.mxu0 0.0
        %989 = vmatprep.subr.mxu0 0.0
        %990 = vmatpush1.xpose.msra.mxu0 0.0
        %991 = vmatprep.subr.mxu0 0.0
        %992 = vmatpush1.xpose.msra.mxu0 0.0
        %993 = vmatprep.subr.mxu0 0.0
        %994 = vmatpush1.xpose.msra.mxu0 0.0
        %995 = vmatprep.subr.mxu0 0.0
        %996 = vmatpush1.xpose.msra.mxu0 0.0
        %997 = vmatprep.subr.mxu0 0.0
        %998 = vmatpush1.xpose.msra.mxu0 0.0
        %999 = vmatprep.subr.mxu0 0.0
        %1000 = vmatpush1.xpose.msra.mxu0 0.0
        %1001 = vmatprep.subr.mxu0 0.0
        %1002 = vmatpush1.xpose.msra.mxu0 0.0
        %1003 = vmatprep.subr.mxu0 0.0
        %1004 = vmatpush1.xpose.msra.mxu0 0.0
        %1005 = vmatprep.subr.mxu0 0.0
        %1006 = vmatpush1.xpose.msra.mxu0 0.0
        %1007 = vmatprep.subr.mxu0 0.0
        %1008 = vmatpush1.xpose.msra.mxu0 0.0
        %1009 = vmatprep.subr.mxu0 0.0
        %1010 = vmatpush1.xpose.msra.mxu0 0.0
        %1011 = vmatprep.subr.mxu0 0.0
        %1012 = vmatpush1.xpose.msra.mxu0 0.0
        %1013 = vmatprep.mubr.f32.mxu0 0.0
        %1014 = vmatmul.mubr.f32.gmra.mrb[0].mxu0 %v482
        %v1015 = vpop.f32.mrb[0].mxu0
        %v1016 = vadd.f32 0.0, %v1015
        %v1017 = vpop.f32.mrb[0].mxu0
        %1018 = vdwg.mxu0
        %v1020 = vsel %vm440, %v941, 0
        %1022 = vmatprep.subr.mxu0 0.0
        %1023 = vmatpush1.xpose.msra.mxu0 %v1020
        %1024 = vmatprep.subr.mxu0 0.0
        %1025 = vmatpush1.xpose.msra.mxu0 0.0
        %1026 = vmatprep.subr.mxu0 0.0
        %1027 = vmatpush1.xpose.msra.mxu0 0.0
        %1028 = vmatprep.subr.mxu0 0.0
        %1029 = vmatpush1.xpose.msra.mxu0 0.0
        %1030 = vmatprep.subr.mxu0 0.0
        %1031 = vmatpush1.xpose.msra.mxu0 0.0
        %1032 = vmatprep.subr.mxu0 0.0
        %1033 = vmatpush1.xpose.msra.mxu0 0.0
        %1034 = vmatprep.subr.mxu0 0.0
        %1035 = vmatpush1.xpose.msra.mxu0 0.0
        %1036 = vmatprep.subr.mxu0 0.0
        %1037 = vmatpush1.xpose.msra.mxu0 0.0
        %1038 = vmatprep.subr.mxu0 0.0
        %1039 = vmatpush1.xpose.msra.mxu0 0.0
        %1040 = vmatprep.subr.mxu0 0.0
        %1041 = vmatpush1.xpose.msra.mxu0 0.0
        %1042 = vmatprep.subr.mxu0 0.0
        %1043 = vmatpush1.xpose.msra.mxu0 0.0
        %1044 = vmatprep.subr.mxu0 0.0
        %1045 = vmatpush1.xpose.msra.mxu0 0.0
        %1046 = vmatprep.subr.mxu0 0.0
        %1047 = vmatpush1.xpose.msra.mxu0 0.0
        %1048 = vmatprep.subr.mxu0 0.0
        %1049 = vmatpush1.xpose.msra.mxu0 0.0
        %1050 = vmatprep.subr.mxu0 0.0
        %1051 = vmatpush1.xpose.msra.mxu0 0.0
        %1052 = vmatprep.subr.mxu0 0.0
        %1053 = vmatpush1.xpose.msra.mxu0 0.0
        %1054 = vmatprep.subr.mxu0 0.0
        %1055 = vmatpush1.xpose.msra.mxu0 0.0
        %1056 = vmatprep.subr.mxu0 0.0
        %1057 = vmatpush1.xpose.msra.mxu0 0.0
        %1058 = vmatprep.subr.mxu0 0.0
        %1059 = vmatpush1.xpose.msra.mxu0 0.0
        %1060 = vmatprep.subr.mxu0 0.0
        %1061 = vmatpush1.xpose.msra.mxu0 0.0
        %1062 = vmatprep.subr.mxu0 0.0
        %1063 = vmatpush1.xpose.msra.mxu0 0.0
        %1064 = vmatprep.subr.mxu0 0.0
        %1065 = vmatpush1.xpose.msra.mxu0 0.0
        %1066 = vmatprep.subr.mxu0 0.0
        %1067 = vmatpush1.xpose.msra.mxu0 0.0
        %1068 = vmatprep.subr.mxu0 0.0
        %1069 = vmatpush1.xpose.msra.mxu0 0.0
        %1070 = vmatprep.subr.mxu0 0.0
        %1071 = vmatpush1.xpose.msra.mxu0 0.0
        %1072 = vmatprep.subr.mxu0 0.0
        %1073 = vmatpush1.xpose.msra.mxu0 0.0
        %1074 = vmatprep.subr.mxu0 0.0
        %1075 = vmatpush1.xpose.msra.mxu0 0.0
        %1076 = vmatprep.subr.mxu0 0.0
        %1077 = vmatpush1.xpose.msra.mxu0 0.0
        %1078 = vmatprep.subr.mxu0 0.0
        %1079 = vmatpush1.xpose.msra.mxu0 0.0
        %1080 = vmatprep.subr.mxu0 0.0
        %1081 = vmatpush1.xpose.msra.mxu0 0.0
        %1082 = vmatprep.subr.mxu0 0.0
        %1083 = vmatpush1.xpose.msra.mxu0 0.0
        %1084 = vmatprep.subr.mxu0 0.0
        %1085 = vmatpush1.xpose.msra.mxu0 0.0
        %1086 = vmatprep.mubr.f32.mxu0 0.0
        %1087 = vmatmul.mubr.f32.gmra.mrb[0].mxu0 %v482
        %v1088 = vpop.f32.mrb[0].mxu0
        %v1089 = vadd.f32 0.0, %v1088
        %v1090 = vpop.f32.mrb[0].mxu0
        %1091 = vdwg.mxu0
        %v1093 = vsel %vm440, %v943, 0
        %1095 = vmatprep.subr.mxu0 0.0
        %1096 = vmatpush1.xpose.msra.mxu0 %v1093
        %1097 = vmatprep.subr.mxu0 0.0
        %1098 = vmatpush1.xpose.msra.mxu0 0.0
        %1099 = vmatprep.subr.mxu0 0.0
        %1100 = vmatpush1.xpose.msra.mxu0 0.0
        %1101 = vmatprep.subr.mxu0 0.0
        %1102 = vmatpush1.xpose.msra.mxu0 0.0
        %1103 = vmatprep.subr.mxu0 0.0
        %1104 = vmatpush1.xpose.msra.mxu0 0.0
        %1105 = vmatprep.subr.mxu0 0.0
        %1106 = vmatpush1.xpose.msra.mxu0 0.0
        %1107 = vmatprep.subr.mxu0 0.0
        %1108 = vmatpush1.xpose.msra.mxu0 0.0
        %1109 = vmatprep.subr.mxu0 0.0
        %1110 = vmatpush1.xpose.msra.mxu0 0.0
        %1111 = vmatprep.subr.mxu0 0.0
        %1112 = vmatpush1.xpose.msra.mxu0 0.0
        %1113 = vmatprep.subr.mxu0 0.0
        %1114 = vmatpush1.xpose.msra.mxu0 0.0
        %1115 = vmatprep.subr.mxu0 0.0
        %1116 = vmatpush1.xpose.msra.mxu0 0.0
        %1117 = vmatprep.subr.mxu0 0.0
        %1118 = vmatpush1.xpose.msra.mxu0 0.0
        %1119 = vmatprep.subr.mxu0 0.0
        %1120 = vmatpush1.xpose.msra.mxu0 0.0
        %1121 = vmatprep.subr.mxu0 0.0
        %1122 = vmatpush1.xpose.msra.mxu0 0.0
        %1123 = vmatprep.subr.mxu0 0.0
        %1124 = vmatpush1.xpose.msra.mxu0 0.0
        %1125 = vmatprep.subr.mxu0 0.0
        %1126 = vmatpush1.xpose.msra.mxu0 0.0
        %1127 = vmatprep.subr.mxu0 0.0
        %1128 = vmatpush1.xpose.msra.mxu0 0.0
        %1129 = vmatprep.subr.mxu0 0.0
        %1130 = vmatpush1.xpose.msra.mxu0 0.0
        %1131 = vmatprep.subr.mxu0 0.0
        %1132 = vmatpush1.xpose.msra.mxu0 0.0
        %1133 = vmatprep.subr.mxu0 0.0
        %1134 = vmatpush1.xpose.msra.mxu0 0.0
        %1135 = vmatprep.subr.mxu0 0.0
        %1136 = vmatpush1.xpose.msra.mxu0 0.0
        %1137 = vmatprep.subr.mxu0 0.0
        %1138 = vmatpush1.xpose.msra.mxu0 0.0
        %1139 = vmatprep.subr.mxu0 0.0
        %1140 = vmatpush1.xpose.msra.mxu0 0.0
        %1141 = vmatprep.subr.mxu0 0.0
        %1142 = vmatpush1.xpose.msra.mxu0 0.0
        %1143 = vmatprep.subr.mxu0 0.0
        %1144 = vmatpush1.xpose.msra.mxu0 0.0
        %1145 = vmatprep.subr.mxu0 0.0
        %1146 = vmatpush1.xpose.msra.mxu0 0.0
        %1147 = vmatprep.subr.mxu0 0.0
        %1148 = vmatpush1.xpose.msra.mxu0 0.0
        %1149 = vmatprep.subr.mxu0 0.0
        %1150 = vmatpush1.xpose.msra.mxu0 0.0
        %1151 = vmatprep.subr.mxu0 0.0
        %1152 = vmatpush1.xpose.msra.mxu0 0.0
        %1153 = vmatprep.subr.mxu0 0.0
        %1154 = vmatpush1.xpose.msra.mxu0 0.0
        %1155 = vmatprep.subr.mxu0 0.0
        %1156 = vmatpush1.xpose.msra.mxu0 0.0
        %1157 = vmatprep.subr.mxu0 0.0
        %1158 = vmatpush1.xpose.msra.mxu0 0.0
        %1159 = vmatprep.mubr.f32.mxu0 0.0
        %1160 = vmatmul.mubr.f32.gmra.mrb[0].mxu0 %v482
        %v1161 = vpop.f32.mrb[0].mxu0
        %v1162 = vadd.f32 0.0, %v1161
        %v1163 = vpop.f32.mrb[0].mxu0
        %1164 = vdwg.mxu0
        %v1166 = vsel %vm703, %v1016, 0
        %v1169 = vsel %vm703, %v1089, 0
        %1171 = vmatprep.subr.mxu0 0.0
        %1172 = vmatpush1.xpose.msra.mxu0 %v1169
        %1173 = vmatprep.subr.mxu0 0.0
        %1174 = vmatpush1.xpose.msra.mxu0 0.0
        %1175 = vmatprep.subr.mxu0 0.0
        %1176 = vmatpush1.xpose.msra.mxu0 0.0
        %1177 = vmatprep.subr.mxu0 0.0
        %1178 = vmatpush1.xpose.msra.mxu0 0.0
        %1179 = vmatprep.subr.mxu0 0.0
        %1180 = vmatpush1.xpose.msra.mxu0 0.0
        %1181 = vmatprep.subr.mxu0 0.0
        %1182 = vmatpush1.xpose.msra.mxu0 0.0
        %1183 = vmatprep.subr.mxu0 0.0
        %1184 = vmatpush1.xpose.msra.mxu0 0.0
        %1185 = vmatprep.subr.mxu0 0.0
        %1186 = vmatpush1.xpose.msra.mxu0 0.0
        %1187 = vmatprep.subr.mxu0 0.0
        %1188 = vmatpush1.xpose.msra.mxu0 0.0
        %1189 = vmatprep.subr.mxu0 0.0
        %1190 = vmatpush1.xpose.msra.mxu0 0.0
        %1191 = vmatprep.subr.mxu0 0.0
        %1192 = vmatpush1.xpose.msra.mxu0 0.0
        %1193 = vmatprep.subr.mxu0 0.0
        %1194 = vmatpush1.xpose.msra.mxu0 0.0
        %1195 = vmatprep.subr.mxu0 0.0
        %1196 = vmatpush1.xpose.msra.mxu0 0.0
        %1197 = vmatprep.subr.mxu0 0.0
        %1198 = vmatpush1.xpose.msra.mxu0 0.0
        %1199 = vmatprep.subr.mxu0 0.0
        %1200 = vmatpush1.xpose.msra.mxu0 0.0
        %1201 = vmatprep.subr.mxu0 0.0
        %1202 = vmatpush1.xpose.msra.mxu0 0.0
        %1203 = vmatprep.subr.mxu0 0.0
        %1204 = vmatpush1.xpose.msra.mxu0 0.0
        %1205 = vmatprep.subr.mxu0 0.0
        %1206 = vmatpush1.xpose.msra.mxu0 0.0
        %1207 = vmatprep.subr.mxu0 0.0
        %1208 = vmatpush1.xpose.msra.mxu0 0.0
        %1209 = vmatprep.subr.mxu0 0.0
        %1210 = vmatpush1.xpose.msra.mxu0 0.0
        %1211 = vmatprep.subr.mxu0 0.0
        %1212 = vmatpush1.xpose.msra.mxu0 0.0
        %1213 = vmatprep.subr.mxu0 0.0
        %1214 = vmatpush1.xpose.msra.mxu0 0.0
        %1215 = vmatprep.subr.mxu0 0.0
        %1216 = vmatpush1.xpose.msra.mxu0 0.0
        %1217 = vmatprep.subr.mxu0 0.0
        %1218 = vmatpush1.xpose.msra.mxu0 0.0
        %1219 = vmatprep.subr.mxu0 0.0
        %1220 = vmatpush1.xpose.msra.mxu0 0.0
        %1221 = vmatprep.subr.mxu0 0.0
        %1222 = vmatpush1.xpose.msra.mxu0 0.0
        %1223 = vmatprep.subr.mxu0 0.0
        %1224 = vmatpush1.xpose.msra.mxu0 0.0
        %1225 = vmatprep.subr.mxu0 0.0
        %1226 = vmatpush1.xpose.msra.mxu0 0.0
        %1227 = vmatprep.subr.mxu0 0.0
        %1228 = vmatpush1.xpose.msra.mxu0 0.0
        %1229 = vmatprep.subr.mxu0 0.0
        %1230 = vmatpush1.xpose.msra.mxu0 0.0
        %1231 = vmatprep.subr.mxu0 0.0
        %1232 = vmatpush1.xpose.msra.mxu0 0.0
        %1233 = vmatprep.subr.mxu0 0.0
        %1234 = vmatpush1.xpose.msra.mxu0 0.0
        %1235 = vmatprep.mubr.f32.mxu0 0.0
        %1236 = vmatmul.mubr.f32.gmra.mrb[0].mxu0 %v1166
        %v1237 = vpop.f32.mrb[0].mxu0
        %v1238 = vadd.f32 %v437, %v1237
        %v1239 = vpop.f32.mrb[0].mxu0
        %1240 = vdwg.mxu0
        %v1241 = vsel %vm703, %v1238, -inf
        %1242 = vmax.xlane.f32.xlu0 %v1241
        %v1243 = vpop.xlane.xlu0 %1242
        %v1244 = vsub.f32 %v1238, %v1243
        %v1245 = vmul.f32 %v1244, 1.442695
        %v1246 = vpow.pop %v1245
        %v1247 = vsel %vm703, %v1246, 0.0
        %1248 = vadd.xlane.f32.xlu0 %v1247
        %v1249 = vpop.xlane.xlu0 %1248
        %v1250 = vrcp.pop %v1249
        %v1252 = vsel %vm703, %v1246, 0
        %1254 = vmatprep.subr.mxu0 0.0
        %1255 = vmatpush1.msra.mxu0 %v1162
        %1256 = vmatprep.subr.mxu0 0.0
        %1257 = vmatpush1.msra.mxu0 0.0
        %1258 = vmatprep.subr.mxu0 0.0
        %1259 = vmatpush1.msra.mxu0 0.0
        %1260 = vmatprep.subr.mxu0 0.0
        %1261 = vmatpush1.msra.mxu0 0.0
        %1262 = vmatprep.subr.mxu0 0.0
        %1263 = vmatpush1.msra.mxu0 0.0
        %1264 = vmatprep.subr.mxu0 0.0
        %1265 = vmatpush1.msra.mxu0 0.0
        %1266 = vmatprep.subr.mxu0 0.0
        %1267 = vmatpush1.msra.mxu0 0.0
        %1268 = vmatprep.subr.mxu0 0.0
        %1269 = vmatpush1.msra.mxu0 0.0
        %1270 = vmatprep.subr.mxu0 0.0
        %1271 = vmatpush1.msra.mxu0 0.0
        %1272 = vmatprep.subr.mxu0 0.0
        %1273 = vmatpush1.msra.mxu0 0.0
        %1274 = vmatprep.subr.mxu0 0.0
        %1275 = vmatpush1.msra.mxu0 0.0
        %1276 = vmatprep.subr.mxu0 0.0
        %1277 = vmatpush1.msra.mxu0 0.0
        %1278 = vmatprep.subr.mxu0 0.0
        %1279 = vmatpush1.msra.mxu0 0.0
        %1280 = vmatprep.subr.mxu0 0.0
        %1281 = vmatpush1.msra.mxu0 0.0
        %1282 = vmatprep.subr.mxu0 0.0
        %1283 = vmatpush1.msra.mxu0 0.0
        %1284 = vmatprep.subr.mxu0 0.0
        %1285 = vmatpush1.msra.mxu0 0.0
        %1286 = vmatprep.subr.mxu0 0.0
        %1287 = vmatpush1.msra.mxu0 0.0
        %1288 = vmatprep.subr.mxu0 0.0
        %1289 = vmatpush1.msra.mxu0 0.0
        %1290 = vmatprep.subr.mxu0 0.0
        %1291 = vmatpush1.msra.mxu0 0.0
        %1292 = vmatprep.subr.mxu0 0.0
        %1293 = vmatpush1.msra.mxu0 0.0
        %1294 = vmatprep.subr.mxu0 0.0
        %1295 = vmatpush1.msra.mxu0 0.0
        %1296 = vmatprep.subr.mxu0 0.0
        %1297 = vmatpush1.msra.mxu0 0.0
        %1298 = vmatprep.subr.mxu0 0.0
        %1299 = vmatpush1.msra.mxu0 0.0
        %1300 = vmatprep.subr.mxu0 0.0
        %1301 = vmatpush1.msra.mxu0 0.0
        %1302 = vmatprep.subr.mxu0 0.0
        %1303 = vmatpush1.msra.mxu0 0.0
        %1304 = vmatprep.subr.mxu0 0.0
        %1305 = vmatpush1.msra.mxu0 0.0
        %1306 = vmatprep.subr.mxu0 0.0
        %1307 = vmatpush1.msra.mxu0 0.0
        %1308 = vmatprep.subr.mxu0 0.0
        %1309 = vmatpush1.msra.mxu0 0.0
        %1310 = vmatprep.subr.mxu0 0.0
        %1311 = vmatpush1.msra.mxu0 0.0
        %1312 = vmatprep.subr.mxu0 0.0
        %1313 = vmatpush1.msra.mxu0 0.0
        %1314 = vmatprep.subr.mxu0 0.0
        %1315 = vmatpush1.msra.mxu0 0.0
        %1316 = vmatprep.subr.mxu0 0.0
        %1317 = vmatpush1.msra.mxu0 0.0
        %1318 = vmatprep.mubr.f32.mxu0 0.0
        %1319 = vmatmul.mubr.f32.gmra.mrb[0].mxu0 %v1252
        %v1320 = vpop.f32.mrb[0].mxu0
        %v1321 = vadd.f32 0.0, %v1320
        %v1322 = vpop.f32.mrb[0].mxu0
        %1323 = vdwg.mxu0
        %v1324 = vmul.f32 %v1321, %v1250
        %v1326 = vsel %vm703, %v1324, 0
        %1328 = vmatprep.subr.mxu0 0.0
        %1329 = vmatpush1.msra.mxu0 %v945
        %1330 = vmatprep.subr.mxu0 0.0
        %1331 = vmatpush1.msra.mxu0 0.0
        %1332 = vmatprep.subr.mxu0 0.0
        %1333 = vmatpush1.msra.mxu0 0.0
        %1334 = vmatprep.subr.mxu0 0.0
        %1335 = vmatpush1.msra.mxu0 0.0
        %1336 = vmatprep.subr.mxu0 0.0
        %1337 = vmatpush1.msra.mxu0 0.0
        %1338 = vmatprep.subr.mxu0 0.0
        %1339 = vmatpush1.msra.mxu0 0.0
        %1340 = vmatprep.subr.mxu0 0.0
        %1341 = vmatpush1.msra.mxu0 0.0
        %1342 = vmatprep.subr.mxu0 0.0
        %1343 = vmatpush1.msra.mxu0 0.0
        %1344 = vmatprep.subr.mxu0 0.0
        %1345 = vmatpush1.msra.mxu0 0.0
        %1346 = vmatprep.subr.mxu0 0.0
        %1347 = vmatpush1.msra.mxu0 0.0
        %1348 = vmatprep.subr.mxu0 0.0
        %1349 = vmatpush1.msra.mxu0 0.0
        %1350 = vmatprep.subr.mxu0 0.0
        %1351 = vmatpush1.msra.mxu0 0.0
        %1352 = vmatprep.subr.mxu0 0.0
        %1353 = vmatpush1.msra.mxu0 0.0
        %1354 = vmatprep.subr.mxu0 0.0
        %1355 = vmatpush1.msra.mxu0 0.0
        %1356 = vmatprep.subr.mxu0 0.0
        %1357 = vmatpush1.msra.mxu0 0.0
        %1358 = vmatprep.subr.mxu0 0.0
        %1359 = vmatpush1.msra.mxu0 0.0
        %1360 = vmatprep.subr.mxu0 0.0
        %1361 = vmatpush1.msra.mxu0 0.0
        %1362 = vmatprep.subr.mxu0 0.0
        %1363 = vmatpush1.msra.mxu0 0.0
        %1364 = vmatprep.subr.mxu0 0.0
        %1365 = vmatpush1.msra.mxu0 0.0
        %1366 = vmatprep.subr.mxu0 0.0
        %1367 = vmatpush1.msra.mxu0 0.0
        %1368 = vmatprep.subr.mxu0 0.0
        %1369 = vmatpush1.msra.mxu0 0.0
        %1370 = vmatprep.subr.mxu0 0.0
        %1371 = vmatpush1.msra.mxu0 0.0
        %1372 = vmatprep.subr.mxu0 0.0
        %1373 = vmatpush1.msra.mxu0 0.0
        %1374 = vmatprep.subr.mxu0 0.0
        %1375 = vmatpush1.msra.mxu0 0.0
        %1376 = vmatprep.subr.mxu0 0.0
        %1377 = vmatpush1.msra.mxu0 0.0
        %1378 = vmatprep.subr.mxu0 0.0
        %1379 = vmatpush1.msra.mxu0 0.0
        %1380 = vmatprep.subr.mxu0 0.0
        %1381 = vmatpush1.msra.mxu0 0.0
        %1382 = vmatprep.subr.mxu0 0.0
        %1383 = vmatpush1.msra.mxu0 0.0
        %1384 = vmatprep.subr.mxu0 0.0
        %1385 = vmatpush1.msra.mxu0 0.0
        %1386 = vmatprep.subr.mxu0 0.0
        %1387 = vmatpush1.msra.mxu0 0.0
        %1388 = vmatprep.subr.mxu0 0.0
        %1389 = vmatpush1.msra.mxu0 0.0
        %1390 = vmatprep.subr.mxu0 0.0
        %1391 = vmatpush1.msra.mxu0 0.0
        %1392 = vmatprep.mubr.f32.mxu0 0.0
        %1393 = vmatmul.mubr.f32.gmra.mrb[0].mxu0 %v1326
        %v1394 = vpop.f32.mrb[0].mxu0
        %v1395 = vadd.f32 0.0, %v1394
        %v1396 = vpop.f32.mrb[0].mxu0
        %1397 = vdwg.mxu0
        %v1398 = vadd.f32 %v937, %v1395
        %s1399 = scalar_lea.vmem [#allocation7], 16
        %v1400 = vld [vmem:[%s1399] sm:$0xff]
        %s1401 = scalar_lea.vmem [#allocation8], 16
        %v1402 = vld [vmem:[%s1401] sm:$0xff]
        %s1403 = scalar_lea.vmem [#allocation10], 16
        %v1404 = vld [vmem:[%s1403] sm:$0xff]
        %s1405 = scalar_lea.vmem [#allocation11], 16
        %v1406 = vld [vmem:[%s1405] sm:$0xff]
        %v1408 = vsel %vm440, %v1400, 0
        %1410 = vmatprep.subr.mxu0 0.0
        %1411 = vmatpush1.xpose.msra.mxu0 %v1408
        %1412 = vmatprep.subr.mxu0 0.0
        %1413 = vmatpush1.xpose.msra.mxu0 0.0
        %1414 = vmatprep.subr.mxu0 0.0
        %1415 = vmatpush1.xpose.msra.mxu0 0.0
        %1416 = vmatprep.subr.mxu0 0.0
        %1417 = vmatpush1.xpose.msra.mxu0 0.0
        %1418 = vmatprep.subr.mxu0 0.0
        %1419 = vmatpush1.xpose.msra.mxu0 0.0
        %1420 = vmatprep.subr.mxu0 0.0
        %1421 = vmatpush1.xpose.msra.mxu0 0.0
        %1422 = vmatprep.subr.mxu0 0.0
        %1423 = vmatpush1.xpose.msra.mxu0 0.0
        %1424 = vmatprep.subr.mxu0 0.0
        %1425 = vmatpush1.xpose.msra.mxu0 0.0
        %1426 = vmatprep.subr.mxu0 0.0
        %1427 = vmatpush1.xpose.msra.mxu0 0.0
        %1428 = vmatprep.subr.mxu0 0.0
        %1429 = vmatpush1.xpose.msra.mxu0 0.0
        %1430 = vmatprep.subr.mxu0 0.0
        %1431 = vmatpush1.xpose.msra.mxu0 0.0
        %1432 = vmatprep.subr.mxu0 0.0
        %1433 = vmatpush1.xpose.msra.mxu0 0.0
        %1434 = vmatprep.subr.mxu0 0.0
        %1435 = vmatpush1.xpose.msra.mxu0 0.0
        %1436 = vmatprep.subr.mxu0 0.0
        %1437 = vmatpush1.xpose.msra.mxu0 0.0
        %1438 = vmatprep.subr.mxu0 0.0
        %1439 = vmatpush1.xpose.msra.mxu0 0.0
        %1440 = vmatprep.subr.mxu0 0.0
        %1441 = vmatpush1.xpose.msra.mxu0 0.0
        %1442 = vmatprep.subr.mxu0 0.0
        %1443 = vmatpush1.xpose.msra.mxu0 0.0
        %1444 = vmatprep.subr.mxu0 0.0
        %1445 = vmatpush1.xpose.msra.mxu0 0.0
        %1446 = vmatprep.subr.mxu0 0.0
        %1447 = vmatpush1.xpose.msra.mxu0 0.0
        %1448 = vmatprep.subr.mxu0 0.0
        %1449 = vmatpush1.xpose.msra.mxu0 0.0
        %1450 = vmatprep.subr.mxu0 0.0
        %1451 = vmatpush1.xpose.msra.mxu0 0.0
        %1452 = vmatprep.subr.mxu0 0.0
        %1453 = vmatpush1.xpose.msra.mxu0 0.0
        %1454 = vmatprep.subr.mxu0 0.0
        %1455 = vmatpush1.xpose.msra.mxu0 0.0
        %1456 = vmatprep.subr.mxu0 0.0
        %1457 = vmatpush1.xpose.msra.mxu0 0.0
        %1458 = vmatprep.subr.mxu0 0.0
        %1459 = vmatpush1.xpose.msra.mxu0 0.0
        %1460 = vmatprep.subr.mxu0 0.0
        %1461 = vmatpush1.xpose.msra.mxu0 0.0
        %1462 = vmatprep.subr.mxu0 0.0
        %1463 = vmatpush1.xpose.msra.mxu0 0.0
        %1464 = vmatprep.subr.mxu0 0.0
        %1465 = vmatpush1.xpose.msra.mxu0 0.0
        %1466 = vmatprep.subr.mxu0 0.0
        %1467 = vmatpush1.xpose.msra.mxu0 0.0
        %1468 = vmatprep.subr.mxu0 0.0
        %1469 = vmatpush1.xpose.msra.mxu0 0.0
        %1470 = vmatprep.subr.mxu0 0.0
        %1471 = vmatpush1.xpose.msra.mxu0 0.0
        %1472 = vmatprep.subr.mxu0 0.0
        %1473 = vmatpush1.xpose.msra.mxu0 0.0
        %1474 = vmatprep.mubr.f32.mxu0 0.0
        %1475 = vmatmul.mubr.f32.gmra.mrb[0].mxu0 %v482
        %v1476 = vpop.f32.mrb[0].mxu0
        %v1477 = vadd.f32 0.0, %v1476
        %v1478 = vpop.f32.mrb[0].mxu0
        %1479 = vdwg.mxu0
        %v1481 = vsel %vm440, %v1402, 0
        %1483 = vmatprep.subr.mxu0 0.0
        %1484 = vmatpush1.xpose.msra.mxu0 %v1481
        %1485 = vmatprep.subr.mxu0 0.0
        %1486 = vmatpush1.xpose.msra.mxu0 0.0
        %1487 = vmatprep.subr.mxu0 0.0
        %1488 = vmatpush1.xpose.msra.mxu0 0.0
        %1489 = vmatprep.subr.mxu0 0.0
        %1490 = vmatpush1.xpose.msra.mxu0 0.0
        %1491 = vmatprep.subr.mxu0 0.0
        %1492 = vmatpush1.xpose.msra.mxu0 0.0
        %1493 = vmatprep.subr.mxu0 0.0
        %1494 = vmatpush1.xpose.msra.mxu0 0.0
        %1495 = vmatprep.subr.mxu0 0.0
        %1496 = vmatpush1.xpose.msra.mxu0 0.0
        %1497 = vmatprep.subr.mxu0 0.0
        %1498 = vmatpush1.xpose.msra.mxu0 0.0
        %1499 = vmatprep.subr.mxu0 0.0
        %1500 = vmatpush1.xpose.msra.mxu0 0.0
        %1501 = vmatprep.subr.mxu0 0.0
        %1502 = vmatpush1.xpose.msra.mxu0 0.0
        %1503 = vmatprep.subr.mxu0 0.0
        %1504 = vmatpush1.xpose.msra.mxu0 0.0
        %1505 = vmatprep.subr.mxu0 0.0
        %1506 = vmatpush1.xpose.msra.mxu0 0.0
        %1507 = vmatprep.subr.mxu0 0.0
        %1508 = vmatpush1.xpose.msra.mxu0 0.0
        %1509 = vmatprep.subr.mxu0 0.0
        %1510 = vmatpush1.xpose.msra.mxu0 0.0
        %1511 = vmatprep.subr.mxu0 0.0
        %1512 = vmatpush1.xpose.msra.mxu0 0.0
        %1513 = vmatprep.subr.mxu0 0.0
        %1514 = vmatpush1.xpose.msra.mxu0 0.0
        %1515 = vmatprep.subr.mxu0 0.0
        %1516 = vmatpush1.xpose.msra.mxu0 0.0
        %1517 = vmatprep.subr.mxu0 0.0
        %1518 = vmatpush1.xpose.msra.mxu0 0.0
        %1519 = vmatprep.subr.mxu0 0.0
        %1520 = vmatpush1.xpose.msra.mxu0 0.0
        %1521 = vmatprep.subr.mxu0 0.0
        %1522 = vmatpush1.xpose.msra.mxu0 0.0
        %1523 = vmatprep.subr.mxu0 0.0
        %1524 = vmatpush1.xpose.msra.mxu0 0.0
        %1525 = vmatprep.subr.mxu0 0.0
        %1526 = vmatpush1.xpose.msra.mxu0 0.0
        %1527 = vmatprep.subr.mxu0 0.0
        %1528 = vmatpush1.xpose.msra.mxu0 0.0
        %1529 = vmatprep.subr.mxu0 0.0
        %1530 = vmatpush1.xpose.msra.mxu0 0.0
        %1531 = vmatprep.subr.mxu0 0.0
        %1532 = vmatpush1.xpose.msra.mxu0 0.0
        %1533 = vmatprep.subr.mxu0 0.0
        %1534 = vmatpush1.xpose.msra.mxu0 0.0
        %1535 = vmatprep.subr.mxu0 0.0
        %1536 = vmatpush1.xpose.msra.mxu0 0.0
        %1537 = vmatprep.subr.mxu0 0.0
        %1538 = vmatpush1.xpose.msra.mxu0 0.0
        %1539 = vmatprep.subr.mxu0 0.0
        %1540 = vmatpush1.xpose.msra.mxu0 0.0
        %1541 = vmatprep.subr.mxu0 0.0
        %1542 = vmatpush1.xpose.msra.mxu0 0.0
        %1543 = vmatprep.subr.mxu0 0.0
        %1544 = vmatpush1.xpose.msra.mxu0 0.0
        %1545 = vmatprep.subr.mxu0 0.0
        %1546 = vmatpush1.xpose.msra.mxu0 0.0
        %1547 = vmatprep.mubr.f32.mxu0 0.0
        %1548 = vmatmul.mubr.f32.gmra.mrb[0].mxu0 %v482
        %v1549 = vpop.f32.mrb[0].mxu0
        %v1550 = vadd.f32 0.0, %v1549
        %v1551 = vpop.f32.mrb[0].mxu0
        %1552 = vdwg.mxu0
        %v1554 = vsel %vm440, %v1404, 0
        %1556 = vmatprep.subr.mxu0 0.0
        %1557 = vmatpush1.xpose.msra.mxu0 %v1554
        %1558 = vmatprep.subr.mxu0 0.0
        %1559 = vmatpush1.xpose.msra.mxu0 0.0
        %1560 = vmatprep.subr.mxu0 0.0
        %1561 = vmatpush1.xpose.msra.mxu0 0.0
        %1562 = vmatprep.subr.mxu0 0.0
        %1563 = vmatpush1.xpose.msra.mxu0 0.0
        %1564 = vmatprep.subr.mxu0 0.0
        %1565 = vmatpush1.xpose.msra.mxu0 0.0
        %1566 = vmatprep.subr.mxu0 0.0
        %1567 = vmatpush1.xpose.msra.mxu0 0.0
        %1568 = vmatprep.subr.mxu0 0.0
        %1569 = vmatpush1.xpose.msra.mxu0 0.0
        %1570 = vmatprep.subr.mxu0 0.0
        %1571 = vmatpush1.xpose.msra.mxu0 0.0
        %1572 = vmatprep.subr.mxu0 0.0
        %1573 = vmatpush1.xpose.msra.mxu0 0.0
        %1574 = vmatprep.subr.mxu0 0.0
        %1575 = vmatpush1.xpose.msra.mxu0 0.0
        %1576 = vmatprep.subr.mxu0 0.0
        %1577 = vmatpush1.xpose.msra.mxu0 0.0
        %1578 = vmatprep.subr.mxu0 0.0
        %1579 = vmatpush1.xpose.msra.mxu0 0.0
        %1580 = vmatprep.subr.mxu0 0.0
        %1581 = vmatpush1.xpose.msra.mxu0 0.0
        %1582 = vmatprep.subr.mxu0 0.0
        %1583 = vmatpush1.xpose.msra.mxu0 0.0
        %1584 = vmatprep.subr.mxu0 0.0
        %1585 = vmatpush1.xpose.msra.mxu0 0.0
        %1586 = vmatprep.subr.mxu0 0.0
        %1587 = vmatpush1.xpose.msra.mxu0 0.0
        %1588 = vmatprep.subr.mxu0 0.0
        %1589 = vmatpush1.xpose.msra.mxu0 0.0
        %1590 = vmatprep.subr.mxu0 0.0
        %1591 = vmatpush1.xpose.msra.mxu0 0.0
        %1592 = vmatprep.subr.mxu0 0.0
        %1593 = vmatpush1.xpose.msra.mxu0 0.0
        %1594 = vmatprep.subr.mxu0 0.0
        %1595 = vmatpush1.xpose.msra.mxu0 0.0
        %1596 = vmatprep.subr.mxu0 0.0
        %1597 = vmatpush1.xpose.msra.mxu0 0.0
        %1598 = vmatprep.subr.mxu0 0.0
        %1599 = vmatpush1.xpose.msra.mxu0 0.0
        %1600 = vmatprep.subr.mxu0 0.0
        %1601 = vmatpush1.xpose.msra.mxu0 0.0
        %1602 = vmatprep.subr.mxu0 0.0
        %1603 = vmatpush1.xpose.msra.mxu0 0.0
        %1604 = vmatprep.subr.mxu0 0.0
        %1605 = vmatpush1.xpose.msra.mxu0 0.0
        %1606 = vmatprep.subr.mxu0 0.0
        %1607 = vmatpush1.xpose.msra.mxu0 0.0
        %1608 = vmatprep.subr.mxu0 0.0
        %1609 = vmatpush1.xpose.msra.mxu0 0.0
        %1610 = vmatprep.subr.mxu0 0.0
        %1611 = vmatpush1.xpose.msra.mxu0 0.0
        %1612 = vmatprep.subr.mxu0 0.0
        %1613 = vmatpush1.xpose.msra.mxu0 0.0
        %1614 = vmatprep.subr.mxu0 0.0
        %1615 = vmatpush1.xpose.msra.mxu0 0.0
        %1616 = vmatprep.subr.mxu0 0.0
        %1617 = vmatpush1.xpose.msra.mxu0 0.0
        %1618 = vmatprep.subr.mxu0 0.0
        %1619 = vmatpush1.xpose.msra.mxu0 0.0
        %1620 = vmatprep.mubr.f32.mxu0 0.0
        %1621 = vmatmul.mubr.f32.gmra.mrb[0].mxu0 %v482
        %v1622 = vpop.f32.mrb[0].mxu0
        %v1623 = vadd.f32 0.0, %v1622
        %v1624 = vpop.f32.mrb[0].mxu0
        %1625 = vdwg.mxu0
        %v1627 = vsel %vm703, %v1477, 0
        %v1630 = vsel %vm703, %v1550, 0
        %1632 = vmatprep.subr.mxu0 0.0
        %1633 = vmatpush1.xpose.msra.mxu0 %v1630
        %1634 = vmatprep.subr.mxu0 0.0
        %1635 = vmatpush1.xpose.msra.mxu0 0.0
        %1636 = vmatprep.subr.mxu0 0.0
        %1637 = vmatpush1.xpose.msra.mxu0 0.0
        %1638 = vmatprep.subr.mxu0 0.0
        %1639 = vmatpush1.xpose.msra.mxu0 0.0
        %1640 = vmatprep.subr.mxu0 0.0
        %1641 = vmatpush1.xpose.msra.mxu0 0.0
        %1642 = vmatprep.subr.mxu0 0.0
        %1643 = vmatpush1.xpose.msra.mxu0 0.0
        %1644 = vmatprep.subr.mxu0 0.0
        %1645 = vmatpush1.xpose.msra.mxu0 0.0
        %1646 = vmatprep.subr.mxu0 0.0
        %1647 = vmatpush1.xpose.msra.mxu0 0.0
        %1648 = vmatprep.subr.mxu0 0.0
        %1649 = vmatpush1.xpose.msra.mxu0 0.0
        %1650 = vmatprep.subr.mxu0 0.0
        %1651 = vmatpush1.xpose.msra.mxu0 0.0
        %1652 = vmatprep.subr.mxu0 0.0
        %1653 = vmatpush1.xpose.msra.mxu0 0.0
        %1654 = vmatprep.subr.mxu0 0.0
        %1655 = vmatpush1.xpose.msra.mxu0 0.0
        %1656 = vmatprep.subr.mxu0 0.0
        %1657 = vmatpush1.xpose.msra.mxu0 0.0
        %1658 = vmatprep.subr.mxu0 0.0
        %1659 = vmatpush1.xpose.msra.mxu0 0.0
        %1660 = vmatprep.subr.mxu0 0.0
        %1661 = vmatpush1.xpose.msra.mxu0 0.0
        %1662 = vmatprep.subr.mxu0 0.0
        %1663 = vmatpush1.xpose.msra.mxu0 0.0
        %1664 = vmatprep.subr.mxu0 0.0
        %1665 = vmatpush1.xpose.msra.mxu0 0.0
        %1666 = vmatprep.subr.mxu0 0.0
        %1667 = vmatpush1.xpose.msra.mxu0 0.0
        %1668 = vmatprep.subr.mxu0 0.0
        %1669 = vmatpush1.xpose.msra.mxu0 0.0
        %1670 = vmatprep.subr.mxu0 0.0
        %1671 = vmatpush1.xpose.msra.mxu0 0.0
        %1672 = vmatprep.subr.mxu0 0.0
        %1673 = vmatpush1.xpose.msra.mxu0 0.0
        %1674 = vmatprep.subr.mxu0 0.0
        %1675 = vmatpush1.xpose.msra.mxu0 0.0
        %1676 = vmatprep.subr.mxu0 0.0
        %1677 = vmatpush1.xpose.msra.mxu0 0.0
        %1678 = vmatprep.subr.mxu0 0.0
        %1679 = vmatpush1.xpose.msra.mxu0 0.0
        %1680 = vmatprep.subr.mxu0 0.0
        %1681 = vmatpush1.xpose.msra.mxu0 0.0
        %1682 = vmatprep.subr.mxu0 0.0
        %1683 = vmatpush1.xpose.msra.mxu0 0.0
        %1684 = vmatprep.subr.mxu0 0.0
        %1685 = vmatpush1.xpose.msra.mxu0 0.0
        %1686 = vmatprep.subr.mxu0 0.0
        %1687 = vmatpush1.xpose.msra.mxu0 0.0
        %1688 = vmatprep.subr.mxu0 0.0
        %1689 = vmatpush1.xpose.msra.mxu0 0.0
        %1690 = vmatprep.subr.mxu0 0.0
        %1691 = vmatpush1.xpose.msra.mxu0 0.0
        %1692 = vmatprep.subr.mxu0 0.0
        %1693 = vmatpush1.xpose.msra.mxu0 0.0
        %1694 = vmatprep.subr.mxu0 0.0
        %1695 = vmatpush1.xpose.msra.mxu0 0.0
        %1696 = vmatprep.mubr.f32.mxu0 0.0
        %1697 = vmatmul.mubr.f32.gmra.mrb[0].mxu0 %v1627
        %v1698 = vpop.f32.mrb[0].mxu0
        %v1699 = vadd.f32 %v437, %v1698
        %v1700 = vpop.f32.mrb[0].mxu0
        %1701 = vdwg.mxu0
        %v1702 = vsel %vm703, %v1699, -inf
        %1703 = vmax.xlane.f32.xlu0 %v1702
        %v1704 = vpop.xlane.xlu0 %1703
        %v1705 = vsub.f32 %v1699, %v1704
        %v1706 = vmul.f32 %v1705, 1.442695
        %v1707 = vpow.pop %v1706
        %v1708 = vsel %vm703, %v1707, 0.0
        %1709 = vadd.xlane.f32.xlu0 %v1708
        %v1710 = vpop.xlane.xlu0 %1709
        %v1711 = vrcp.pop %v1710
        %v1713 = vsel %vm703, %v1707, 0
        %1715 = vmatprep.subr.mxu0 0.0
        %1716 = vmatpush1.msra.mxu0 %v1623
        %1717 = vmatprep.subr.mxu0 0.0
        %1718 = vmatpush1.msra.mxu0 0.0
        %1719 = vmatprep.subr.mxu0 0.0
        %1720 = vmatpush1.msra.mxu0 0.0
        %1721 = vmatprep.subr.mxu0 0.0
        %1722 = vmatpush1.msra.mxu0 0.0
        %1723 = vmatprep.subr.mxu0 0.0
        %1724 = vmatpush1.msra.mxu0 0.0
        %1725 = vmatprep.subr.mxu0 0.0
        %1726 = vmatpush1.msra.mxu0 0.0
        %1727 = vmatprep.subr.mxu0 0.0
        %1728 = vmatpush1.msra.mxu0 0.0
        %1729 = vmatprep.subr.mxu0 0.0
        %1730 = vmatpush1.msra.mxu0 0.0
        %1731 = vmatprep.subr.mxu0 0.0
        %1732 = vmatpush1.msra.mxu0 0.0
        %1733 = vmatprep.subr.mxu0 0.0
        %1734 = vmatpush1.msra.mxu0 0.0
        %1735 = vmatprep.subr.mxu0 0.0
        %1736 = vmatpush1.msra.mxu0 0.0
        %1737 = vmatprep.subr.mxu0 0.0
        %1738 = vmatpush1.msra.mxu0 0.0
        %1739 = vmatprep.subr.mxu0 0.0
        %1740 = vmatpush1.msra.mxu0 0.0
        %1741 = vmatprep.subr.mxu0 0.0
        %1742 = vmatpush1.msra.mxu0 0.0
        %1743 = vmatprep.subr.mxu0 0.0
        %1744 = vmatpush1.msra.mxu0 0.0
        %1745 = vmatprep.subr.mxu0 0.0
        %1746 = vmatpush1.msra.mxu0 0.0
        %1747 = vmatprep.subr.mxu0 0.0
        %1748 = vmatpush1.msra.mxu0 0.0
        %1749 = vmatprep.subr.mxu0 0.0
        %1750 = vmatpush1.msra.mxu0 0.0
        %1751 = vmatprep.subr.mxu0 0.0
        %1752 = vmatpush1.msra.mxu0 0.0
        %1753 = vmatprep.subr.mxu0 0.0
        %1754 = vmatpush1.msra.mxu0 0.0
        %1755 = vmatprep.subr.mxu0 0.0
        %1756 = vmatpush1.msra.mxu0 0.0
        %1757 = vmatprep.subr.mxu0 0.0
        %1758 = vmatpush1.msra.mxu0 0.0
        %1759 = vmatprep.subr.mxu0 0.0
        %1760 = vmatpush1.msra.mxu0 0.0
        %1761 = vmatprep.subr.mxu0 0.0
        %1762 = vmatpush1.msra.mxu0 0.0
        %1763 = vmatprep.subr.mxu0 0.0
        %1764 = vmatpush1.msra.mxu0 0.0
        %1765 = vmatprep.subr.mxu0 0.0
        %1766 = vmatpush1.msra.mxu0 0.0
        %1767 = vmatprep.subr.mxu0 0.0
        %1768 = vmatpush1.msra.mxu0 0.0
        %1769 = vmatprep.subr.mxu0 0.0
        %1770 = vmatpush1.msra.mxu0 0.0
        %1771 = vmatprep.subr.mxu0 0.0
        %1772 = vmatpush1.msra.mxu0 0.0
        %1773 = vmatprep.subr.mxu0 0.0
        %1774 = vmatpush1.msra.mxu0 0.0
        %1775 = vmatprep.subr.mxu0 0.0
        %1776 = vmatpush1.msra.mxu0 0.0
        %1777 = vmatprep.subr.mxu0 0.0
        %1778 = vmatpush1.msra.mxu0 0.0
        %1779 = vmatprep.mubr.f32.mxu0 0.0
        %1780 = vmatmul.mubr.f32.gmra.mrb[0].mxu0 %v1713
        %v1781 = vpop.f32.mrb[0].mxu0
        %v1782 = vadd.f32 0.0, %v1781
        %v1783 = vpop.f32.mrb[0].mxu0
        %1784 = vdwg.mxu0
        %v1785 = vmul.f32 %v1782, %v1711
        %v1787 = vsel %vm703, %v1785, 0
        %1789 = vmatprep.subr.mxu0 0.0
        %1790 = vmatpush1.msra.mxu0 %v1406
        %1791 = vmatprep.subr.mxu0 0.0
        %1792 = vmatpush1.msra.mxu0 0.0
        %1793 = vmatprep.subr.mxu0 0.0
        %1794 = vmatpush1.msra.mxu0 0.0
        %1795 = vmatprep.subr.mxu0 0.0
        %1796 = vmatpush1.msra.mxu0 0.0
        %1797 = vmatprep.subr.mxu0 0.0
        %1798 = vmatpush1.msra.mxu0 0.0
        %1799 = vmatprep.subr.mxu0 0.0
        %1800 = vmatpush1.msra.mxu0 0.0
        %1801 = vmatprep.subr.mxu0 0.0
        %1802 = vmatpush1.msra.mxu0 0.0
        %1803 = vmatprep.subr.mxu0 0.0
        %1804 = vmatpush1.msra.mxu0 0.0
        %1805 = vmatprep.subr.mxu0 0.0
        %1806 = vmatpush1.msra.mxu0 0.0
        %1807 = vmatprep.subr.mxu0 0.0
        %1808 = vmatpush1.msra.mxu0 0.0
        %1809 = vmatprep.subr.mxu0 0.0
        %1810 = vmatpush1.msra.mxu0 0.0
        %1811 = vmatprep.subr.mxu0 0.0
        %1812 = vmatpush1.msra.mxu0 0.0
        %1813 = vmatprep.subr.mxu0 0.0
        %1814 = vmatpush1.msra.mxu0 0.0
        %1815 = vmatprep.subr.mxu0 0.0
        %1816 = vmatpush1.msra.mxu0 0.0
        %1817 = vmatprep.subr.mxu0 0.0
        %1818 = vmatpush1.msra.mxu0 0.0
        %1819 = vmatprep.subr.mxu0 0.0
        %1820 = vmatpush1.msra.mxu0 0.0
        %1821 = vmatprep.subr.mxu0 0.0
        %1822 = vmatpush1.msra.mxu0 0.0
        %1823 = vmatprep.subr.mxu0 0.0
        %1824 = vmatpush1.msra.mxu0 0.0
        %1825 = vmatprep.subr.mxu0 0.0
        %1826 = vmatpush1.msra.mxu0 0.0
        %1827 = vmatprep.subr.mxu0 0.0
        %1828 = vmatpush1.msra.mxu0 0.0
        %1829 = vmatprep.subr.mxu0 0.0
        %1830 = vmatpush1.msra.mxu0 0.0
        %1831 = vmatprep.subr.mxu0 0.0
        %1832 = vmatpush1.msra.mxu0 0.0
        %1833 = vmatprep.subr.mxu0 0.0
        %1834 = vmatpush1.msra.mxu0 0.0
        %1835 = vmatprep.subr.mxu0 0.0
        %1836 = vmatpush1.msra.mxu0 0.0
        %1837 = vmatprep.subr.mxu0 0.0
        %1838 = vmatpush1.msra.mxu0 0.0
        %1839 = vmatprep.subr.mxu0 0.0
        %1840 = vmatpush1.msra.mxu0 0.0
        %1841 = vmatprep.subr.mxu0 0.0
        %1842 = vmatpush1.msra.mxu0 0.0
        %1843 = vmatprep.subr.mxu0 0.0
        %1844 = vmatpush1.msra.mxu0 0.0
        %1845 = vmatprep.subr.mxu0 0.0
        %1846 = vmatpush1.msra.mxu0 0.0
        %1847 = vmatprep.subr.mxu0 0.0
        %1848 = vmatpush1.msra.mxu0 0.0
        %1849 = vmatprep.subr.mxu0 0.0
        %1850 = vmatpush1.msra.mxu0 0.0
        %1851 = vmatprep.subr.mxu0 0.0
        %1852 = vmatpush1.msra.mxu0 0.0
        %1853 = vmatprep.mubr.f32.mxu0 0.0
        %1854 = vmatmul.mubr.f32.gmra.mrb[0].mxu0 %v1787
        %v1855 = vpop.f32.mrb[0].mxu0
        %v1856 = vadd.f32 0.0, %v1855
        %v1857 = vpop.f32.mrb[0].mxu0
        %1858 = vdwg.mxu0
        %v1859 = vadd.f32 %v1398, %v1856
        %s1860 = scalar_lea.vmem [#allocation7], 24
        %v1861 = vld [vmem:[%s1860] sm:$0xff]
        %s1862 = scalar_lea.vmem [#allocation8], 24
        %v1863 = vld [vmem:[%s1862] sm:$0xff]
        %s1864 = scalar_lea.vmem [#allocation10], 24
        %v1865 = vld [vmem:[%s1864] sm:$0xff]
        %s1866 = scalar_lea.vmem [#allocation11], 24
        %v1867 = vld [vmem:[%s1866] sm:$0xff]
        %v1869 = vsel %vm440, %v1861, 0
        %1871 = vmatprep.subr.mxu0 0.0
        %1872 = vmatpush1.xpose.msra.mxu0 %v1869
        %1873 = vmatprep.subr.mxu0 0.0
        %1874 = vmatpush1.xpose.msra.mxu0 0.0
        %1875 = vmatprep.subr.mxu0 0.0
        %1876 = vmatpush1.xpose.msra.mxu0 0.0
        %1877 = vmatprep.subr.mxu0 0.0
        %1878 = vmatpush1.xpose.msra.mxu0 0.0
        %1879 = vmatprep.subr.mxu0 0.0
        %1880 = vmatpush1.xpose.msra.mxu0 0.0
        %1881 = vmatprep.subr.mxu0 0.0
        %1882 = vmatpush1.xpose.msra.mxu0 0.0
        %1883 = vmatprep.subr.mxu0 0.0
        %1884 = vmatpush1.xpose.msra.mxu0 0.0
        %1885 = vmatprep.subr.mxu0 0.0
        %1886 = vmatpush1.xpose.msra.mxu0 0.0
        %1887 = vmatprep.subr.mxu0 0.0
        %1888 = vmatpush1.xpose.msra.mxu0 0.0
        %1889 = vmatprep.subr.mxu0 0.0
        %1890 = vmatpush1.xpose.msra.mxu0 0.0
        %1891 = vmatprep.subr.mxu0 0.0
        %1892 = vmatpush1.xpose.msra.mxu0 0.0
        %1893 = vmatprep.subr.mxu0 0.0
        %1894 = vmatpush1.xpose.msra.mxu0 0.0
        %1895 = vmatprep.subr.mxu0 0.0
        %1896 = vmatpush1.xpose.msra.mxu0 0.0
        %1897 = vmatprep.subr.mxu0 0.0
        %1898 = vmatpush1.xpose.msra.mxu0 0.0
        %1899 = vmatprep.subr.mxu0 0.0
        %1900 = vmatpush1.xpose.msra.mxu0 0.0
        %1901 = vmatprep.subr.mxu0 0.0
        %1902 = vmatpush1.xpose.msra.mxu0 0.0
        %1903 = vmatprep.subr.mxu0 0.0
        %1904 = vmatpush1.xpose.msra.mxu0 0.0
        %1905 = vmatprep.subr.mxu0 0.0
        %1906 = vmatpush1.xpose.msra.mxu0 0.0
        %1907 = vmatprep.subr.mxu0 0.0
        %1908 = vmatpush1.xpose.msra.mxu0 0.0
        %1909 = vmatprep.subr.mxu0 0.0
        %1910 = vmatpush1.xpose.msra.mxu0 0.0
        %1911 = vmatprep.subr.mxu0 0.0
        %1912 = vmatpush1.xpose.msra.mxu0 0.0
        %1913 = vmatprep.subr.mxu0 0.0
        %1914 = vmatpush1.xpose.msra.mxu0 0.0
        %1915 = vmatprep.subr.mxu0 0.0
        %1916 = vmatpush1.xpose.msra.mxu0 0.0
        %1917 = vmatprep.subr.mxu0 0.0
        %1918 = vmatpush1.xpose.msra.mxu0 0.0
        %1919 = vmatprep.subr.mxu0 0.0
        %1920 = vmatpush1.xpose.msra.mxu0 0.0
        %1921 = vmatprep.subr.mxu0 0.0
        %1922 = vmatpush1.xpose.msra.mxu0 0.0
        %1923 = vmatprep.subr.mxu0 0.0
        %1924 = vmatpush1.xpose.msra.mxu0 0.0
        %1925 = vmatprep.subr.mxu0 0.0
        %1926 = vmatpush1.xpose.msra.mxu0 0.0
        %1927 = vmatprep.subr.mxu0 0.0
        %1928 = vmatpush1.xpose.msra.mxu0 0.0
        %1929 = vmatprep.subr.mxu0 0.0
        %1930 = vmatpush1.xpose.msra.mxu0 0.0
        %1931 = vmatprep.subr.mxu0 0.0
        %1932 = vmatpush1.xpose.msra.mxu0 0.0
        %1933 = vmatprep.subr.mxu0 0.0
        %1934 = vmatpush1.xpose.msra.mxu0 0.0
        %1935 = vmatprep.mubr.f32.mxu0 0.0
        %1936 = vmatmul.mubr.f32.gmra.mrb[0].mxu0 %v482
        %v1937 = vpop.f32.mrb[0].mxu0
        %v1938 = vadd.f32 0.0, %v1937
        %v1939 = vpop.f32.mrb[0].mxu0
        %1940 = vdwg.mxu0
        %v1942 = vsel %vm440, %v1863, 0
        %1944 = vmatprep.subr.mxu0 0.0
        %1945 = vmatpush1.xpose.msra.mxu0 %v1942
        %1946 = vmatprep.subr.mxu0 0.0
        %1947 = vmatpush1.xpose.msra.mxu0 0.0
        %1948 = vmatprep.subr.mxu0 0.0
        %1949 = vmatpush1.xpose.msra.mxu0 0.0
        %1950 = vmatprep.subr.mxu0 0.0
        %1951 = vmatpush1.xpose.msra.mxu0 0.0
        %1952 = vmatprep.subr.mxu0 0.0
        %1953 = vmatpush1.xpose.msra.mxu0 0.0
        %1954 = vmatprep.subr.mxu0 0.0
        %1955 = vmatpush1.xpose.msra.mxu0 0.0
        %1956 = vmatprep.subr.mxu0 0.0
        %1957 = vmatpush1.xpose.msra.mxu0 0.0
        %1958 = vmatprep.subr.mxu0 0.0
        %1959 = vmatpush1.xpose.msra.mxu0 0.0
        %1960 = vmatprep.subr.mxu0 0.0
        %1961 = vmatpush1.xpose.msra.mxu0 0.0
        %1962 = vmatprep.subr.mxu0 0.0
        %1963 = vmatpush1.xpose.msra.mxu0 0.0
        %1964 = vmatprep.subr.mxu0 0.0
        %1965 = vmatpush1.xpose.msra.mxu0 0.0
        %1966 = vmatprep.subr.mxu0 0.0
        %1967 = vmatpush1.xpose.msra.mxu0 0.0
        %1968 = vmatprep.subr.mxu0 0.0
        %1969 = vmatpush1.xpose.msra.mxu0 0.0
        %1970 = vmatprep.subr.mxu0 0.0
        %1971 = vmatpush1.xpose.msra.mxu0 0.0
        %1972 = vmatprep.subr.mxu0 0.0
        %1973 = vmatpush1.xpose.msra.mxu0 0.0
        %1974 = vmatprep.subr.mxu0 0.0
        %1975 = vmatpush1.xpose.msra.mxu0 0.0
        %1976 = vmatprep.subr.mxu0 0.0
        %1977 = vmatpush1.xpose.msra.mxu0 0.0
        %1978 = vmatprep.subr.mxu0 0.0
        %1979 = vmatpush1.xpose.msra.mxu0 0.0
        %1980 = vmatprep.subr.mxu0 0.0
        %1981 = vmatpush1.xpose.msra.mxu0 0.0
        %1982 = vmatprep.subr.mxu0 0.0
        %1983 = vmatpush1.xpose.msra.mxu0 0.0
        %1984 = vmatprep.subr.mxu0 0.0
        %1985 = vmatpush1.xpose.msra.mxu0 0.0
        %1986 = vmatprep.subr.mxu0 0.0
        %1987 = vmatpush1.xpose.msra.mxu0 0.0
        %1988 = vmatprep.subr.mxu0 0.0
        %1989 = vmatpush1.xpose.msra.mxu0 0.0
        %1990 = vmatprep.subr.mxu0 0.0
        %1991 = vmatpush1.xpose.msra.mxu0 0.0
        %1992 = vmatprep.subr.mxu0 0.0
        %1993 = vmatpush1.xpose.msra.mxu0 0.0
        %1994 = vmatprep.subr.mxu0 0.0
        %1995 = vmatpush1.xpose.msra.mxu0 0.0
        %1996 = vmatprep.subr.mxu0 0.0
        %1997 = vmatpush1.xpose.msra.mxu0 0.0
        %1998 = vmatprep.subr.mxu0 0.0
        %1999 = vmatpush1.xpose.msra.mxu0 0.0
        %2000 = vmatprep.subr.mxu0 0.0
        %2001 = vmatpush1.xpose.msra.mxu0 0.0
        %2002 = vmatprep.subr.mxu0 0.0
        %2003 = vmatpush1.xpose.msra.mxu0 0.0
        %2004 = vmatprep.subr.mxu0 0.0
        %2005 = vmatpush1.xpose.msra.mxu0 0.0
        %2006 = vmatprep.subr.mxu0 0.0
        %2007 = vmatpush1.xpose.msra.mxu0 0.0
        %2008 = vmatprep.mubr.f32.mxu0 0.0
        %2009 = vmatmul.mubr.f32.gmra.mrb[0].mxu0 %v482
        %v2010 = vpop.f32.mrb[0].mxu0
        %v2011 = vadd.f32 0.0, %v2010
        %v2012 = vpop.f32.mrb[0].mxu0
        %2013 = vdwg.mxu0
        %v2015 = vsel %vm440, %v1865, 0
        %2017 = vmatprep.subr.mxu0 0.0
        %2018 = vmatpush1.xpose.msra.mxu0 %v2015
        %2019 = vmatprep.subr.mxu0 0.0
        %2020 = vmatpush1.xpose.msra.mxu0 0.0
        %2021 = vmatprep.subr.mxu0 0.0
        %2022 = vmatpush1.xpose.msra.mxu0 0.0
        %2023 = vmatprep.subr.mxu0 0.0
        %2024 = vmatpush1.xpose.msra.mxu0 0.0
        %2025 = vmatprep.subr.mxu0 0.0
        %2026 = vmatpush1.xpose.msra.mxu0 0.0
        %2027 = vmatprep.subr.mxu0 0.0
        %2028 = vmatpush1.xpose.msra.mxu0 0.0
        %2029 = vmatprep.subr.mxu0 0.0
        %2030 = vmatpush1.xpose.msra.mxu0 0.0
        %2031 = vmatprep.subr.mxu0 0.0
        %2032 = vmatpush1.xpose.msra.mxu0 0.0
        %2033 = vmatprep.subr.mxu0 0.0
        %2034 = vmatpush1.xpose.msra.mxu0 0.0
        %2035 = vmatprep.subr.mxu0 0.0
        %2036 = vmatpush1.xpose.msra.mxu0 0.0
        %2037 = vmatprep.subr.mxu0 0.0
        %2038 = vmatpush1.xpose.msra.mxu0 0.0
        %2039 = vmatprep.subr.mxu0 0.0
        %2040 = vmatpush1.xpose.msra.mxu0 0.0
        %2041 = vmatprep.subr.mxu0 0.0
        %2042 = vmatpush1.xpose.msra.mxu0 0.0
        %2043 = vmatprep.subr.mxu0 0.0
        %2044 = vmatpush1.xpose.msra.mxu0 0.0
        %2045 = vmatprep.subr.mxu0 0.0
        %2046 = vmatpush1.xpose.msra.mxu0 0.0
        %2047 = vmatprep.subr.mxu0 0.0
        %2048 = vmatpush1.xpose.msra.mxu0 0.0
        %2049 = vmatprep.subr.mxu0 0.0
        %2050 = vmatpush1.xpose.msra.mxu0 0.0
        %2051 = vmatprep.subr.mxu0 0.0
        %2052 = vmatpush1.xpose.msra.mxu0 0.0
        %2053 = vmatprep.subr.mxu0 0.0
        %2054 = vmatpush1.xpose.msra.mxu0 0.0
        %2055 = vmatprep.subr.mxu0 0.0
        %2056 = vmatpush1.xpose.msra.mxu0 0.0
        %2057 = vmatprep.subr.mxu0 0.0
        %2058 = vmatpush1.xpose.msra.mxu0 0.0
        %2059 = vmatprep.subr.mxu0 0.0
        %2060 = vmatpush1.xpose.msra.mxu0 0.0
        %2061 = vmatprep.subr.mxu0 0.0
        %2062 = vmatpush1.xpose.msra.mxu0 0.0
        %2063 = vmatprep.subr.mxu0 0.0
        %2064 = vmatpush1.xpose.msra.mxu0 0.0
        %2065 = vmatprep.subr.mxu0 0.0
        %2066 = vmatpush1.xpose.msra.mxu0 0.0
        %2067 = vmatprep.subr.mxu0 0.0
        %2068 = vmatpush1.xpose.msra.mxu0 0.0
        %2069 = vmatprep.subr.mxu0 0.0
        %2070 = vmatpush1.xpose.msra.mxu0 0.0
        %2071 = vmatprep.subr.mxu0 0.0
        %2072 = vmatpush1.xpose.msra.mxu0 0.0
        %2073 = vmatprep.subr.mxu0 0.0
        %2074 = vmatpush1.xpose.msra.mxu0 0.0
        %2075 = vmatprep.subr.mxu0 0.0
        %2076 = vmatpush1.xpose.msra.mxu0 0.0
        %2077 = vmatprep.subr.mxu0 0.0
        %2078 = vmatpush1.xpose.msra.mxu0 0.0
        %2079 = vmatprep.subr.mxu0 0.0
        %2080 = vmatpush1.xpose.msra.mxu0 0.0
        %2081 = vmatprep.mubr.f32.mxu0 0.0
        %2082 = vmatmul.mubr.f32.gmra.mrb[0].mxu0 %v482
        %v2083 = vpop.f32.mrb[0].mxu0
        %v2084 = vadd.f32 0.0, %v2083
        %v2085 = vpop.f32.mrb[0].mxu0
        %2086 = vdwg.mxu0
        %v2088 = vsel %vm703, %v1938, 0
        %v2091 = vsel %vm703, %v2011, 0
        %2093 = vmatprep.subr.mxu0 0.0
        %2094 = vmatpush1.xpose.msra.mxu0 %v2091
        %2095 = vmatprep.subr.mxu0 0.0
        %2096 = vmatpush1.xpose.msra.mxu0 0.0
        %2097 = vmatprep.subr.mxu0 0.0
        %2098 = vmatpush1.xpose.msra.mxu0 0.0
        %2099 = vmatprep.subr.mxu0 0.0
        %2100 = vmatpush1.xpose.msra.mxu0 0.0
        %2101 = vmatprep.subr.mxu0 0.0
        %2102 = vmatpush1.xpose.msra.mxu0 0.0
        %2103 = vmatprep.subr.mxu0 0.0
        %2104 = vmatpush1.xpose.msra.mxu0 0.0
        %2105 = vmatprep.subr.mxu0 0.0
        %2106 = vmatpush1.xpose.msra.mxu0 0.0
        %2107 = vmatprep.subr.mxu0 0.0
        %2108 = vmatpush1.xpose.msra.mxu0 0.0
        %2109 = vmatprep.subr.mxu0 0.0
        %2110 = vmatpush1.xpose.msra.mxu0 0.0
        %2111 = vmatprep.subr.mxu0 0.0
        %2112 = vmatpush1.xpose.msra.mxu0 0.0
        %2113 = vmatprep.subr.mxu0 0.0
        %2114 = vmatpush1.xpose.msra.mxu0 0.0
        %2115 = vmatprep.subr.mxu0 0.0
        %2116 = vmatpush1.xpose.msra.mxu0 0.0
        %2117 = vmatprep.subr.mxu0 0.0
        %2118 = vmatpush1.xpose.msra.mxu0 0.0
        %2119 = vmatprep.subr.mxu0 0.0
        %2120 = vmatpush1.xpose.msra.mxu0 0.0
        %2121 = vmatprep.subr.mxu0 0.0
        %2122 = vmatpush1.xpose.msra.mxu0 0.0
        %2123 = vmatprep.subr.mxu0 0.0
        %2124 = vmatpush1.xpose.msra.mxu0 0.0
        %2125 = vmatprep.subr.mxu0 0.0
        %2126 = vmatpush1.xpose.msra.mxu0 0.0
        %2127 = vmatprep.subr.mxu0 0.0
        %2128 = vmatpush1.xpose.msra.mxu0 0.0
        %2129 = vmatprep.subr.mxu0 0.0
        %2130 = vmatpush1.xpose.msra.mxu0 0.0
        %2131 = vmatprep.subr.mxu0 0.0
        %2132 = vmatpush1.xpose.msra.mxu0 0.0
        %2133 = vmatprep.subr.mxu0 0.0
        %2134 = vmatpush1.xpose.msra.mxu0 0.0
        %2135 = vmatprep.subr.mxu0 0.0
        %2136 = vmatpush1.xpose.msra.mxu0 0.0
        %2137 = vmatprep.subr.mxu0 0.0
        %2138 = vmatpush1.xpose.msra.mxu0 0.0
        %2139 = vmatprep.subr.mxu0 0.0
        %2140 = vmatpush1.xpose.msra.mxu0 0.0
        %2141 = vmatprep.subr.mxu0 0.0
        %2142 = vmatpush1.xpose.msra.mxu0 0.0
        %2143 = vmatprep.subr.mxu0 0.0
        %2144 = vmatpush1.xpose.msra.mxu0 0.0
        %2145 = vmatprep.subr.mxu0 0.0
        %2146 = vmatpush1.xpose.msra.mxu0 0.0
        %2147 = vmatprep.subr.mxu0 0.0
        %2148 = vmatpush1.xpose.msra.mxu0 0.0
        %2149 = vmatprep.subr.mxu0 0.0
        %2150 = vmatpush1.xpose.msra.mxu0 0.0
        %2151 = vmatprep.subr.mxu0 0.0
        %2152 = vmatpush1.xpose.msra.mxu0 0.0
        %2153 = vmatprep.subr.mxu0 0.0
        %2154 = vmatpush1.xpose.msra.mxu0 0.0
        %2155 = vmatprep.subr.mxu0 0.0
        %2156 = vmatpush1.xpose.msra.mxu0 0.0
        %2157 = vmatprep.mubr.f32.mxu0 0.0
        %2158 = vmatmul.mubr.f32.gmra.mrb[0].mxu0 %v2088
        %v2159 = vpop.f32.mrb[0].mxu0
        %v2160 = vadd.f32 %v437, %v2159
        %v2161 = vpop.f32.mrb[0].mxu0
        %2162 = vdwg.mxu0
        %v2163 = vsel %vm703, %v2160, -inf
        %2164 = vmax.xlane.f32.xlu0 %v2163
        %v2165 = vpop.xlane.xlu0 %2164
        %v2166 = vsub.f32 %v2160, %v2165
        %v2167 = vmul.f32 %v2166, 1.442695
        %v2168 = vpow.pop %v2167
        %v2169 = vsel %vm703, %v2168, 0.0
        %2170 = vadd.xlane.f32.xlu0 %v2169
        %v2171 = vpop.xlane.xlu0 %2170
        %v2172 = vrcp.pop %v2171
        %v2174 = vsel %vm703, %v2168, 0
        %2176 = vmatprep.subr.mxu0 0.0
        %2177 = vmatpush1.msra.mxu0 %v2084
        %2178 = vmatprep.subr.mxu0 0.0
        %2179 = vmatpush1.msra.mxu0 0.0
        %2180 = vmatprep.subr.mxu0 0.0
        %2181 = vmatpush1.msra.mxu0 0.0
        %2182 = vmatprep.subr.mxu0 0.0
        %2183 = vmatpush1.msra.mxu0 0.0
        %2184 = vmatprep.subr.mxu0 0.0
        %2185 = vmatpush1.msra.mxu0 0.0
        %2186 = vmatprep.subr.mxu0 0.0
        %2187 = vmatpush1.msra.mxu0 0.0
        %2188 = vmatprep.subr.mxu0 0.0
        %2189 = vmatpush1.msra.mxu0 0.0
        %2190 = vmatprep.subr.mxu0 0.0
        %2191 = vmatpush1.msra.mxu0 0.0
        %2192 = vmatprep.subr.mxu0 0.0
        %2193 = vmatpush1.msra.mxu0 0.0
        %2194 = vmatprep.subr.mxu0 0.0
        %2195 = vmatpush1.msra.mxu0 0.0
        %2196 = vmatprep.subr.mxu0 0.0
        %2197 = vmatpush1.msra.mxu0 0.0
        %2198 = vmatprep.subr.mxu0 0.0
        %2199 = vmatpush1.msra.mxu0 0.0
        %2200 = vmatprep.subr.mxu0 0.0
        %2201 = vmatpush1.msra.mxu0 0.0
        %2202 = vmatprep.subr.mxu0 0.0
        %2203 = vmatpush1.msra.mxu0 0.0
        %2204 = vmatprep.subr.mxu0 0.0
        %2205 = vmatpush1.msra.mxu0 0.0
        %2206 = vmatprep.subr.mxu0 0.0
        %2207 = vmatpush1.msra.mxu0 0.0
        %2208 = vmatprep.subr.mxu0 0.0
        %2209 = vmatpush1.msra.mxu0 0.0
        %2210 = vmatprep.subr.mxu0 0.0
        %2211 = vmatpush1.msra.mxu0 0.0
        %2212 = vmatprep.subr.mxu0 0.0
        %2213 = vmatpush1.msra.mxu0 0.0
        %2214 = vmatprep.subr.mxu0 0.0
        %2215 = vmatpush1.msra.mxu0 0.0
        %2216 = vmatprep.subr.mxu0 0.0
        %2217 = vmatpush1.msra.mxu0 0.0
        %2218 = vmatprep.subr.mxu0 0.0
        %2219 = vmatpush1.msra.mxu0 0.0
        %2220 = vmatprep.subr.mxu0 0.0
        %2221 = vmatpush1.msra.mxu0 0.0
        %2222 = vmatprep.subr.mxu0 0.0
        %2223 = vmatpush1.msra.mxu0 0.0
        %2224 = vmatprep.subr.mxu0 0.0
        %2225 = vmatpush1.msra.mxu0 0.0
        %2226 = vmatprep.subr.mxu0 0.0
        %2227 = vmatpush1.msra.mxu0 0.0
        %2228 = vmatprep.subr.mxu0 0.0
        %2229 = vmatpush1.msra.mxu0 0.0
        %2230 = vmatprep.subr.mxu0 0.0
        %2231 = vmatpush1.msra.mxu0 0.0
        %2232 = vmatprep.subr.mxu0 0.0
        %2233 = vmatpush1.msra.mxu0 0.0
        %2234 = vmatprep.subr.mxu0 0.0
        %2235 = vmatpush1.msra.mxu0 0.0
        %2236 = vmatprep.subr.mxu0 0.0
        %2237 = vmatpush1.msra.mxu0 0.0
        %2238 = vmatprep.subr.mxu0 0.0
        %2239 = vmatpush1.msra.mxu0 0.0
        %2240 = vmatprep.mubr.f32.mxu0 0.0
        %2241 = vmatmul.mubr.f32.gmra.mrb[0].mxu0 %v2174
        %v2242 = vpop.f32.mrb[0].mxu0
        %v2243 = vadd.f32 0.0, %v2242
        %v2244 = vpop.f32.mrb[0].mxu0
        %2245 = vdwg.mxu0
        %v2246 = vmul.f32 %v2243, %v2172
        %v2248 = vsel %vm703, %v2246, 0
        %2250 = vmatprep.subr.mxu0 0.0
        %2251 = vmatpush1.msra.mxu0 %v1867
        %2252 = vmatprep.subr.mxu0 0.0
        %2253 = vmatpush1.msra.mxu0 0.0
        %2254 = vmatprep.subr.mxu0 0.0
        %2255 = vmatpush1.msra.mxu0 0.0
        %2256 = vmatprep.subr.mxu0 0.0
        %2257 = vmatpush1.msra.mxu0 0.0
        %2258 = vmatprep.subr.mxu0 0.0
        %2259 = vmatpush1.msra.mxu0 0.0
        %2260 = vmatprep.subr.mxu0 0.0
        %2261 = vmatpush1.msra.mxu0 0.0
        %2262 = vmatprep.subr.mxu0 0.0
        %2263 = vmatpush1.msra.mxu0 0.0
        %2264 = vmatprep.subr.mxu0 0.0
        %2265 = vmatpush1.msra.mxu0 0.0
        %2266 = vmatprep.subr.mxu0 0.0
        %2267 = vmatpush1.msra.mxu0 0.0
        %2268 = vmatprep.subr.mxu0 0.0
        %2269 = vmatpush1.msra.mxu0 0.0
        %2270 = vmatprep.subr.mxu0 0.0
        %2271 = vmatpush1.msra.mxu0 0.0
        %2272 = vmatprep.subr.mxu0 0.0
        %2273 = vmatpush1.msra.mxu0 0.0
        %2274 = vmatprep.subr.mxu0 0.0
        %2275 = vmatpush1.msra.mxu0 0.0
        %2276 = vmatprep.subr.mxu0 0.0
        %2277 = vmatpush1.msra.mxu0 0.0
        %2278 = vmatprep.subr.mxu0 0.0
        %2279 = vmatpush1.msra.mxu0 0.0
        %2280 = vmatprep.subr.mxu0 0.0
        %2281 = vmatpush1.msra.mxu0 0.0
        %2282 = vmatprep.subr.mxu0 0.0
        %2283 = vmatpush1.msra.mxu0 0.0
        %2284 = vmatprep.subr.mxu0 0.0
        %2285 = vmatpush1.msra.mxu0 0.0
        %2286 = vmatprep.subr.mxu0 0.0
        %2287 = vmatpush1.msra.mxu0 0.0
        %2288 = vmatprep.subr.mxu0 0.0
        %2289 = vmatpush1.msra.mxu0 0.0
        %2290 = vmatprep.subr.mxu0 0.0
        %2291 = vmatpush1.msra.mxu0 0.0
        %2292 = vmatprep.subr.mxu0 0.0
        %2293 = vmatpush1.msra.mxu0 0.0
        %2294 = vmatprep.subr.mxu0 0.0
        %2295 = vmatpush1.msra.mxu0 0.0
        %2296 = vmatprep.subr.mxu0 0.0
        %2297 = vmatpush1.msra.mxu0 0.0
        %2298 = vmatprep.subr.mxu0 0.0
        %2299 = vmatpush1.msra.mxu0 0.0
        %2300 = vmatprep.subr.mxu0 0.0
        %2301 = vmatpush1.msra.mxu0 0.0
        %2302 = vmatprep.subr.mxu0 0.0
        %2303 = vmatpush1.msra.mxu0 0.0
        %2304 = vmatprep.subr.mxu0 0.0
        %2305 = vmatpush1.msra.mxu0 0.0
        %2306 = vmatprep.subr.mxu0 0.0
        %2307 = vmatpush1.msra.mxu0 0.0
        %2308 = vmatprep.subr.mxu0 0.0
        %2309 = vmatpush1.msra.mxu0 0.0
        %2310 = vmatprep.subr.mxu0 0.0
        %2311 = vmatpush1.msra.mxu0 0.0
        %2312 = vmatprep.subr.mxu0 0.0
        %2313 = vmatpush1.msra.mxu0 0.0
        %2314 = vmatprep.mubr.f32.mxu0 0.0
        %2315 = vmatmul.mubr.f32.gmra.mrb[0].mxu0 %v2248
        %v2316 = vpop.f32.mrb[0].mxu0
        %v2317 = vadd.f32 0.0, %v2316
        %v2318 = vpop.f32.mrb[0].mxu0
        %2319 = vdwg.mxu0
        %v2320 = vadd.f32 %v1859, %v2317
        %2321 = vst.msk [vmem:[%s435] sm:$0xff] %vm440, %v2320
        %s2322 = sand.u32 %s234, 1
        %s2323 = scalar_lea.sflag [#allocation4], %s2322
        %s2324 = sand.u32 %s234, 1
        %s2325 = smul.addr %s2324, 8
        %s2326 = scalar_lea.vmem [#allocation13], %s2325
        // Predicated region
        $region77: #{tpu_custom_call.1} parent=51 // pred_check
          %p2327 = pneg %p244
        $region78: #{tpu_custom_call.1} parent=51 // pred_check_branch
          %2329 = sbr.rel (%p2327) target = $region80
        $region79: #{tpu_custom_call.1} parent=51 // pred_region
          %s2331 = ssub.s32 128, 128
          %2332 = vsyncadd %s2323, %s2331
          %s2333 = sadd.s32 %s35, %s34
          %s2334 = smul.addr %s2333, 128
          %s2335 = scalar_lea.hbm %s8, %s2334
          %s2337 = sshll.u32 %s2326, 4
          %s2338 = int_to_ptr.vmem [resolvable:$true] %s2337
          %2340 = dma.vmem_to_hbm [thread:$0]  %s2338, 128, %s2335, %s2323
        $region80: #{tpu_custom_call.1} parent=51 // pred_fallthru
          _
      $region52: #{tpu_custom_call.1} parent=5 // pred_fallthru
        _
      %p2341 = scmp.le.s32.totalorder 2, %s25
      // Predicated region
      $region81: #{tpu_custom_call.1} parent=5 // pred_check
        %p2342 = pneg %p2341
      $region82: #{tpu_custom_call.1} parent=5 // pred_check_branch
        %2344 = sbr.rel (%p2342) target = $region84
      $region83: #{tpu_custom_call.1} parent=5 // pred_region
        %s2345 = ssub.s32 %s25, 2
        // Predicated region
        $region85: #{tpu_custom_call.1} parent=83 // pred_check
          %p2346 = pneg %p250
        $region86: #{tpu_custom_call.1} parent=83 // pred_check_branch
          %2348 = sbr.rel (%p2346) target = $region88
        $region87: #{tpu_custom_call.1} parent=83 // pred_region
          %s2349 = sand.u32 %s235, 1
          %s2350 = scalar_lea.sflag [#allocation4], %s2349
          %s2351 = sand.u32 %s235, 1
          %s2352 = smul.addr %s2351, 8
          %s2353 = scalar_lea.vmem [#allocation13], %s2352
          %2354 = dma.done %s2350, 128
        $region88: #{tpu_custom_call.1} parent=83 // pred_fallthru
          _
      $region84: #{tpu_custom_call.1} parent=5 // pred_fallthru
        _
    $region6: #{tpu_custom_call.1} parent=1 // loop_footer
      %s29 = sadd.s32 1, %s25
    $region7: #{tpu_custom_call.1} parent=1 // loop_footer_branch
      %24 = sbr.rel target = $region3
    $region8: #{tpu_custom_call.1} parent=1 // loop_exit
      _
    %2355 = vsyncpa [#allocation3], 1
    %s2356 = scalar_lea.sflag [#allocation3], 1
    %2357 = vsyncpa %s2356, 1
    %2358 = vsyncpa [#allocation6], 1
    %s2359 = scalar_lea.sflag [#allocation6], 1
    %2360 = vsyncpa %s2359, 1
    %2361 = vsyncpa [#allocation9], 1
    %2362 = vsyncpa [#allocation12], 1
    %2363 = vsyncpa [#allocation4], 1
    %s2364 = scalar_lea.sflag [#allocation4], 1
    %2365 = vsyncpa %s2364, 1

</llo_original>
